<compile_context>
chip_gen: v5e
topology: v5e:2x2
jax: 0.10.0
libtpu: 0.0.40
codegen_flags: <defaults>
</compile_context>

<pallas_src>
import functools

import jax
import jax.numpy as jnp
from jax.experimental import pallas as pl
from jax.experimental.pallas import tpu as pltpu

# Full-f32 matmuls everywhere (kernel MXU dots and the pure-JAX reference) so
# the 1e-5 numerical check is apples-to-apples.  For production on v6e/v7x this
# can be relaxed to bf16 MXU operands once the tolerance allows it.
jax.config.update("jax_default_matmul_precision", "highest")

DIM = 16
NUM_HEADS = 8
HEAD_DIM = DIM // NUM_HEADS                 # int(D / num_heads) == 2
SCALE = (DIM / NUM_HEADS) ** -0.5           # self.scale = head_dim ** -0.5


def _fused_attention_kernel(x_ref, w6_ref, b6_ref, wp_ref, bp_ref, o_ref,
                            *, batch, seq, heads):
    # x_ref : (B*N, D)
    # w6_ref: (6, D, H)  even/odd-column split of w_qkv in order
    #                    [q_even, q_odd, k_even, k_odd, v_even, v_odd];
    #                    the q halves (and biases) are pre-scaled by SCALE.
    # b6_ref: (6, 1, H)
    # wp_ref: (2, H, D)  even/odd-row split of w_proj
    # bp_ref: (1, D)
    # o_ref : (B*N, D)
    x = x_ref[...]

    # Six small MXU dots instead of one fused dot + six lane sub-slices: the
    # MXU has plenty of slack here and this keeps the XLU out of the QKV path.
    def proj(i):
        return jnp.dot(x, w6_ref[i], preferred_element_type=jnp.float32) + b6_ref[i]

    q0 = proj(0).reshape(batch, seq, heads)   # q[..., dh=0] * scale
    q1 = proj(1).reshape(batch, seq, heads)   # q[..., dh=1] * scale
    k0 = proj(2).reshape(batch, seq, heads)
    k1 = proj(3).reshape(batch, seq, heads)
    v0 = proj(4).reshape(batch, seq, heads)
    v1 = proj(5).reshape(batch, seq, heads)

    # Batched scores for all (batch, head) pairs, laid out (B, Nq, Nk, H).
    # The head_dim=2 contraction is two VPU multiply-adds — no reduce at all.
    s = (q0[:, :, None, :] * k0[:, None, :, :]
         + q1[:, :, None, :] * k1[:, None, :, :])           # (B, N, N, H)

    # One batched softmax over the key axis (axis=2): a single max reduce, one
    # full-width exp, one sum reduce, one exact reciprocal (EUP).
    m = jnp.max(s, axis=2, keepdims=True)                   # (B, N, 1, H)
    e = jnp.exp(s - m)
    denom = jnp.sum(e, axis=2, keepdims=True)               # (B, N, 1, H)
    att = e * pl.reciprocal(denom, approx=False)            # softmax(dim=-1)
    # drop1 is identity (drop_ratio = 0.0)

    # att @ v, split over the two head_dim columns: one batched sublane reduce
    # per half.  o0/o1 come out already in [all heads | dh fixed] column order,
    # so no lane interleave / concatenation is ever needed.
    o0 = jnp.sum(att * v0[:, None, :, :], axis=2)           # (B, N, H)
    o1 = jnp.sum(att * v1[:, None, :, :], axis=2)           # (B, N, H)
    o0 = o0.reshape(batch * seq, heads)
    o1 = o1.reshape(batch * seq, heads)

    # Output projection with w_proj rows pre-split host-side to match the
    # even/odd context layout: two lane-dense MXU dots replace concat + dot.
    y = (jnp.dot(o0, wp_ref[0], preferred_element_type=jnp.float32)
         + jnp.dot(o1, wp_ref[1], preferred_element_type=jnp.float32)
         + bp_ref[...])
    # drop2 is identity (drop_ratio = 0.0)
    o_ref[...] = y.astype(o_ref.dtype)


def prepare_params(w_qkv, b_qkv, w_proj, b_proj):
    """One-time host-side parameter transform (free per call).

    Expects (in_features, out_features) weights, i.e. y = x @ W + b.
    PyTorch nn.Linear stores (out, in): pass module.qkv.weight.T etc.
    """
    D, H, Dh = DIM, NUM_HEADS, HEAD_DIM
    assert w_qkv.shape == (D, 3 * D), "w_qkv must be (in, out) = (D, 3D)"
    assert w_proj.shape == (D, D)

    # reshape(B, N, 3, H, Dh) column order: col = t*D + h*Dh + dh.
    # Split each of q/k/v into its dh=0 (even) / dh=1 (odd) column halves;
    # fold the softmax scale into the q halves.
    def split(t, scale):
        w = w_qkv[:, t * D:(t + 1) * D] * scale
        b = b_qkv[t * D:(t + 1) * D] * scale
        return w[:, 0::Dh], w[:, 1::Dh], b[0::Dh], b[1::Dh]

    wq0, wq1, bq0, bq1 = split(0, SCALE)
    wk0, wk1, bk0, bk1 = split(1, 1.0)
    wv0, wv1, bv0, bv1 = split(2, 1.0)
    w6 = jnp.stack([wq0, wq1, wk0, wk1, wv0, wv1])                    # (6, D, H)
    b6 = jnp.stack([bq0, bq1, bk0, bk1, bv0, bv1]).reshape(6, 1, H)   # (6, 1, H)

    # ctx flatten order is (h, dh): row 2h of w_proj feeds the dh=0 half,
    # row 2h+1 the dh=1 half.
    wp = jnp.stack([w_proj[0::Dh, :], w_proj[1::Dh, :]])              # (2, H, D)
    bp = b_proj.reshape(1, D)
    return w6, b6, wp, bp


@jax.jit
def attention_forward(x, w_qkv, b_qkv, w_proj, b_proj):
    B, N, D = x.shape
    assert D == DIM
    w6, b6, wp, bp = prepare_params(w_qkv, b_qkv, w_proj, b_proj)
    x2 = x.reshape(B * N, D)      # free contiguous reshape, no transpose

    out2 = pl.pallas_call(
        functools.partial(_fused_attention_kernel,
                          batch=B, seq=N, heads=NUM_HEADS),
        out_shape=jax.ShapeDtypeStruct((B * N, D), x.dtype),
        # Single grid step: every operand is a whole-array VMEM block.
        in_specs=[
            pl.BlockSpec(memory_space=pltpu.MemorySpace.VMEM),  # x
            pl.BlockSpec(memory_space=pltpu.MemorySpace.VMEM),  # w6
            pl.BlockSpec(memory_space=pltpu.MemorySpace.VMEM),  # b6
            pl.BlockSpec(memory_space=pltpu.MemorySpace.VMEM),  # wp
            pl.BlockSpec(memory_space=pltpu.MemorySpace.VMEM),  # bp
        ],
        out_specs=pl.BlockSpec(memory_space=pltpu.MemorySpace.VMEM),
    )(x2, w6, b6, wp, bp)
    return out2.reshape(B, N, D)


def reference_forward(x, w_qkv, b_qkv, w_proj, b_proj):
    """Pure-JAX transcription of the PyTorch forward, for verification."""
    B, N, D = x.shape
    H, Dh = NUM_HEADS, HEAD_DIM
    qkv = (x @ w_qkv + b_qkv).reshape(B, N, 3, H, Dh).transpose(2, 0, 3, 1, 4)
    q, k, v = qkv[0], qkv[1], qkv[2]
    att = (q @ jnp.swapaxes(k, -2, -1)) * SCALE
    att = jax.nn.softmax(att, axis=-1)
    ctx = jnp.swapaxes(att @ v, 1, 2).reshape(B, N, D)
    return ctx @ w_proj + b_proj


if __name__ == "__main__":
    B, N, D = 2, 8, DIM
    key = jax.random.PRNGKey(0)
    kx, k1, k2, k3, k4 = jax.random.split(key, 5)

    x = jax.random.normal(kx, (B, N, D), dtype=jnp.float32)
    # Deterministic synthetic parameters (shapes from the module's __init__),
    # stored as (in_features, out_features).
    w_qkv = 0.1 * jax.random.normal(k1, (D, 3 * D), dtype=jnp.float32)
    b_qkv = 0.1 * jax.random.normal(k2, (3 * D,), dtype=jnp.float32)
    w_proj = 0.1 * jax.random.normal(k3, (D, D), dtype=jnp.float32)
    b_proj = 0.1 * jax.random.normal(k4, (D,), dtype=jnp.float32)

    out = attention_forward(x, w_qkv, b_qkv, w_proj, b_proj)
    out = jax.block_until_ready(out)

    ref = reference_forward(x, w_qkv, b_qkv, w_proj, b_proj)
    assert out.shape == (B, N, D)
    assert jnp.allclose(out, ref, atol=1e-5, rtol=1e-5), "mismatch vs reference"
    print("KERNEL_OK")
</pallas_src>

<mosaic_0001>
module attributes {stable_mosaic.version = 11 : i64} {
  func.func @_fused_attention_kernel(%arg0: memref<16x16xf32, #tpu.memory_space<vmem>>, %arg1: memref<6x16x8xf32, #tpu.memory_space<vmem>>, %arg2: memref<6x1x8xf32, #tpu.memory_space<vmem>>, %arg3: memref<2x8x16xf32, #tpu.memory_space<vmem>>, %arg4: memref<1x16xf32, #tpu.memory_space<vmem>>, %arg5: memref<16x16xf32, #tpu.memory_space<vmem>>) attributes {dimension_semantics = [], scalar_prefetch = 0 : i64, scratch_operands = 0 : i64, tpu.core_type = #tpu.core_type<tc>} {
    %c0 = arith.constant 0 : index
    %c0_0 = arith.constant 0 : index
    %0 = vector.load %arg0[%c0, %c0_0] : memref<16x16xf32, #tpu.memory_space<vmem>>, vector<16x16xf32>
    %c0_1 = arith.constant 0 : index
    %c0_2 = arith.constant 0 : index
    %c0_3 = arith.constant 0 : index
    %1 = vector.load %arg1[%c0_1, %c0_2, %c0_3] : memref<6x16x8xf32, #tpu.memory_space<vmem>>, vector<1x16x8xf32>
    %2 = vector.shape_cast %1 : vector<1x16x8xf32> to vector<16x8xf32>
    %cst = arith.constant dense<0.000000e+00> : vector<16x8xf32>
    %3 = tpu.matmul %0, %2, %cst {dimension_numbers = #tpu.dot_dimension_numbers<[1], [0], [0], [1], [0, 0, 1, 1], [], []>, precision = #tpu.contract_precision<fp32>} : vector<16x16xf32>, vector<16x8xf32>, vector<16x8xf32> -> vector<16x8xf32>
    %c0_4 = arith.constant 0 : index
    %c0_5 = arith.constant 0 : index
    %c0_6 = arith.constant 0 : index
    %4 = vector.load %arg2[%c0_4, %c0_5, %c0_6] : memref<6x1x8xf32, #tpu.memory_space<vmem>>, vector<1x1x8xf32>
    %5 = vector.shape_cast %4 : vector<1x1x8xf32> to vector<1x8xf32>
    %6 = vector.broadcast %5 : vector<1x8xf32> to vector<16x8xf32>
    %7 = arith.addf %3, %6 : vector<16x8xf32>
    %8 = vector.shape_cast %7 : vector<16x8xf32> to vector<2x8x8xf32>
    %c1 = arith.constant 1 : index
    %c0_7 = arith.constant 0 : index
    %c0_8 = arith.constant 0 : index
    %9 = vector.load %arg1[%c1, %c0_7, %c0_8] : memref<6x16x8xf32, #tpu.memory_space<vmem>>, vector<1x16x8xf32>
    %10 = vector.shape_cast %9 : vector<1x16x8xf32> to vector<16x8xf32>
    %cst_9 = arith.constant dense<0.000000e+00> : vector<16x8xf32>
    %11 = tpu.matmul %0, %10, %cst_9 {dimension_numbers = #tpu.dot_dimension_numbers<[1], [0], [0], [1], [0, 0, 1, 1], [], []>, precision = #tpu.contract_precision<fp32>} : vector<16x16xf32>, vector<16x8xf32>, vector<16x8xf32> -> vector<16x8xf32>
    %c1_10 = arith.constant 1 : index
    %c0_11 = arith.constant 0 : index
    %c0_12 = arith.constant 0 : index
    %12 = vector.load %arg2[%c1_10, %c0_11, %c0_12] : memref<6x1x8xf32, #tpu.memory_space<vmem>>, vector<1x1x8xf32>
    %13 = vector.shape_cast %12 : vector<1x1x8xf32> to vector<1x8xf32>
    %14 = vector.broadcast %13 : vector<1x8xf32> to vector<16x8xf32>
    %15 = arith.addf %11, %14 : vector<16x8xf32>
    %16 = vector.shape_cast %15 : vector<16x8xf32> to vector<2x8x8xf32>
    %c2 = arith.constant 2 : index
    %c0_13 = arith.constant 0 : index
    %c0_14 = arith.constant 0 : index
    %17 = vector.load %arg1[%c2, %c0_13, %c0_14] : memref<6x16x8xf32, #tpu.memory_space<vmem>>, vector<1x16x8xf32>
    %18 = vector.shape_cast %17 : vector<1x16x8xf32> to vector<16x8xf32>
    %cst_15 = arith.constant dense<0.000000e+00> : vector<16x8xf32>
    %19 = tpu.matmul %0, %18, %cst_15 {dimension_numbers = #tpu.dot_dimension_numbers<[1], [0], [0], [1], [0, 0, 1, 1], [], []>, precision = #tpu.contract_precision<fp32>} : vector<16x16xf32>, vector<16x8xf32>, vector<16x8xf32> -> vector<16x8xf32>
    %c2_16 = arith.constant 2 : index
    %c0_17 = arith.constant 0 : index
    %c0_18 = arith.constant 0 : index
    %20 = vector.load %arg2[%c2_16, %c0_17, %c0_18] : memref<6x1x8xf32, #tpu.memory_space<vmem>>, vector<1x1x8xf32>
    %21 = vector.shape_cast %20 : vector<1x1x8xf32> to vector<1x8xf32>
    %22 = vector.broadcast %21 : vector<1x8xf32> to vector<16x8xf32>
    %23 = arith.addf %19, %22 : vector<16x8xf32>
    %24 = vector.shape_cast %23 : vector<16x8xf32> to vector<2x8x8xf32>
    %c3 = arith.constant 3 : index
    %c0_19 = arith.constant 0 : index
    %c0_20 = arith.constant 0 : index
    %25 = vector.load %arg1[%c3, %c0_19, %c0_20] : memref<6x16x8xf32, #tpu.memory_space<vmem>>, vector<1x16x8xf32>
    %26 = vector.shape_cast %25 : vector<1x16x8xf32> to vector<16x8xf32>
    %cst_21 = arith.constant dense<0.000000e+00> : vector<16x8xf32>
    %27 = tpu.matmul %0, %26, %cst_21 {dimension_numbers = #tpu.dot_dimension_numbers<[1], [0], [0], [1], [0, 0, 1, 1], [], []>, precision = #tpu.contract_precision<fp32>} : vector<16x16xf32>, vector<16x8xf32>, vector<16x8xf32> -> vector<16x8xf32>
    %c3_22 = arith.constant 3 : index
    %c0_23 = arith.constant 0 : index
    %c0_24 = arith.constant 0 : index
    %28 = vector.load %arg2[%c3_22, %c0_23, %c0_24] : memref<6x1x8xf32, #tpu.memory_space<vmem>>, vector<1x1x8xf32>
    %29 = vector.shape_cast %28 : vector<1x1x8xf32> to vector<1x8xf32>
    %30 = vector.broadcast %29 : vector<1x8xf32> to vector<16x8xf32>
    %31 = arith.addf %27, %30 : vector<16x8xf32>
    %32 = vector.shape_cast %31 : vector<16x8xf32> to vector<2x8x8xf32>
    %c4 = arith.constant 4 : index
    %c0_25 = arith.constant 0 : index
    %c0_26 = arith.constant 0 : index
    %33 = vector.load %arg1[%c4, %c0_25, %c0_26] : memref<6x16x8xf32, #tpu.memory_space<vmem>>, vector<1x16x8xf32>
    %34 = vector.shape_cast %33 : vector<1x16x8xf32> to vector<16x8xf32>
    %cst_27 = arith.constant dense<0.000000e+00> : vector<16x8xf32>
    %35 = tpu.matmul %0, %34, %cst_27 {dimension_numbers = #tpu.dot_dimension_numbers<[1], [0], [0], [1], [0, 0, 1, 1], [], []>, precision = #tpu.contract_precision<fp32>} : vector<16x16xf32>, vector<16x8xf32>, vector<16x8xf32> -> vector<16x8xf32>
    %c4_28 = arith.constant 4 : index
    %c0_29 = arith.constant 0 : index
    %c0_30 = arith.constant 0 : index
    %36 = vector.load %arg2[%c4_28, %c0_29, %c0_30] : memref<6x1x8xf32, #tpu.memory_space<vmem>>, vector<1x1x8xf32>
    %37 = vector.shape_cast %36 : vector<1x1x8xf32> to vector<1x8xf32>
    %38 = vector.broadcast %37 : vector<1x8xf32> to vector<16x8xf32>
    %39 = arith.addf %35, %38 : vector<16x8xf32>
    %40 = vector.shape_cast %39 : vector<16x8xf32> to vector<2x8x8xf32>
    %c5 = arith.constant 5 : index
    %c0_31 = arith.constant 0 : index
    %c0_32 = arith.constant 0 : index
    %41 = vector.load %arg1[%c5, %c0_31, %c0_32] : memref<6x16x8xf32, #tpu.memory_space<vmem>>, vector<1x16x8xf32>
    %42 = vector.shape_cast %41 : vector<1x16x8xf32> to vector<16x8xf32>
    %cst_33 = arith.constant dense<0.000000e+00> : vector<16x8xf32>
    %43 = tpu.matmul %0, %42, %cst_33 {dimension_numbers = #tpu.dot_dimension_numbers<[1], [0], [0], [1], [0, 0, 1, 1], [], []>, precision = #tpu.contract_precision<fp32>} : vector<16x16xf32>, vector<16x8xf32>, vector<16x8xf32> -> vector<16x8xf32>
    %c5_34 = arith.constant 5 : index
    %c0_35 = arith.constant 0 : index
    %c0_36 = arith.constant 0 : index
    %44 = vector.load %arg2[%c5_34, %c0_35, %c0_36] : memref<6x1x8xf32, #tpu.memory_space<vmem>>, vector<1x1x8xf32>
    %45 = vector.shape_cast %44 : vector<1x1x8xf32> to vector<1x8xf32>
    %46 = vector.broadcast %45 : vector<1x8xf32> to vector<16x8xf32>
    %47 = arith.addf %43, %46 : vector<16x8xf32>
    %48 = vector.shape_cast %47 : vector<16x8xf32> to vector<2x8x8xf32>
    %49 = vector.shape_cast %8 : vector<2x8x8xf32> to vector<2x8x1x8xf32>
    %50 = vector.shape_cast %24 : vector<2x8x8xf32> to vector<2x1x8x8xf32>
    %51 = vector.broadcast %49 : vector<2x8x1x8xf32> to vector<2x8x8x8xf32>
    %52 = vector.broadcast %50 : vector<2x1x8x8xf32> to vector<2x8x8x8xf32>
    %53 = arith.mulf %51, %52 : vector<2x8x8x8xf32>
    %54 = vector.shape_cast %16 : vector<2x8x8xf32> to vector<2x8x1x8xf32>
    %55 = vector.shape_cast %32 : vector<2x8x8xf32> to vector<2x1x8x8xf32>
    %56 = vector.broadcast %54 : vector<2x8x1x8xf32> to vector<2x8x8x8xf32>
    %57 = vector.broadcast %55 : vector<2x1x8x8xf32> to vector<2x8x8x8xf32>
    %58 = arith.mulf %56, %57 : vector<2x8x8x8xf32>
    %59 = arith.addf %53, %58 : vector<2x8x8x8xf32>
    %cst_37 = arith.constant dense<0xFF800000> : vector<2x8x8xf32>
    %60 = vector.multi_reduction <maximumf>, %59, %cst_37 [2] : vector<2x8x8x8xf32> to vector<2x8x8xf32>
    %61 = vector.shape_cast %60 : vector<2x8x8xf32> to vector<2x8x1x8xf32>
    %62 = vector.broadcast %61 : vector<2x8x1x8xf32> to vector<2x8x8x8xf32>
    %63 = arith.subf %59, %62 : vector<2x8x8x8xf32>
    %64 = math.exp %63 : vector<2x8x8x8xf32>
    %cst_38 = arith.constant dense<0.000000e+00> : vector<2x8x8xf32>
    %65 = vector.multi_reduction <add>, %64, %cst_38 [2] : vector<2x8x8x8xf32> to vector<2x8x8xf32>
    %66 = vector.shape_cast %65 : vector<2x8x8xf32> to vector<2x8x1x8xf32>
    %67 = tpu.reciprocal %66 : vector<2x8x1x8xf32> -> vector<2x8x1x8xf32>
    %68 = vector.broadcast %67 : vector<2x8x1x8xf32> to vector<2x8x8x8xf32>
    %69 = arith.mulf %64, %68 : vector<2x8x8x8xf32>
    %70 = vector.shape_cast %40 : vector<2x8x8xf32> to vector<2x1x8x8xf32>
    %71 = vector.broadcast %70 : vector<2x1x8x8xf32> to vector<2x8x8x8xf32>
    %72 = arith.mulf %69, %71 : vector<2x8x8x8xf32>
    %cst_39 = arith.constant dense<0.000000e+00> : vector<2x8x8xf32>
    %73 = vector.multi_reduction <add>, %72, %cst_39 [2] : vector<2x8x8x8xf32> to vector<2x8x8xf32>
    %74 = vector.shape_cast %48 : vector<2x8x8xf32> to vector<2x1x8x8xf32>
    %75 = vector.broadcast %74 : vector<2x1x8x8xf32> to vector<2x8x8x8xf32>
    %76 = arith.mulf %69, %75 : vector<2x8x8x8xf32>
    %cst_40 = arith.constant dense<0.000000e+00> : vector<2x8x8xf32>
    %77 = vector.multi_reduction <add>, %76, %cst_40 [2] : vector<2x8x8x8xf32> to vector<2x8x8xf32>
    %78 = vector.shape_cast %73 : vector<2x8x8xf32> to vector<16x8xf32>
    %79 = vector.shape_cast %77 : vector<2x8x8xf32> to vector<16x8xf32>
    %c0_41 = arith.constant 0 : index
    %c0_42 = arith.constant 0 : index
    %c0_43 = arith.constant 0 : index
    %80 = vector.load %arg3[%c0_41, %c0_42, %c0_43] : memref<2x8x16xf32, #tpu.memory_space<vmem>>, vector<1x8x16xf32>
    %81 = vector.shape_cast %80 : vector<1x8x16xf32> to vector<8x16xf32>
    %cst_44 = arith.constant dense<0.000000e+00> : vector<16x16xf32>
    %82 = tpu.matmul %78, %81, %cst_44 {dimension_numbers = #tpu.dot_dimension_numbers<[1], [0], [0], [1], [0, 0, 1, 1], [], []>, precision = #tpu.contract_precision<fp32>} : vector<16x8xf32>, vector<8x16xf32>, vector<16x16xf32> -> vector<16x16xf32>
    %c1_45 = arith.constant 1 : index
    %c0_46 = arith.constant 0 : index
    %c0_47 = arith.constant 0 : index
    %83 = vector.load %arg3[%c1_45, %c0_46, %c0_47] : memref<2x8x16xf32, #tpu.memory_space<vmem>>, vector<1x8x16xf32>
    %84 = vector.shape_cast %83 : vector<1x8x16xf32> to vector<8x16xf32>
    %cst_48 = arith.constant dense<0.000000e+00> : vector<16x16xf32>
    %85 = tpu.matmul %79, %84, %cst_48 {dimension_numbers = #tpu.dot_dimension_numbers<[1], [0], [0], [1], [0, 0, 1, 1], [], []>, precision = #tpu.contract_precision<fp32>} : vector<16x8xf32>, vector<8x16xf32>, vector<16x16xf32> -> vector<16x16xf32>
    %86 = arith.addf %82, %85 : vector<16x16xf32>
    %c0_49 = arith.constant 0 : index
    %c0_50 = arith.constant 0 : index
    %87 = vector.load %arg4[%c0_49, %c0_50] : memref<1x16xf32, #tpu.memory_space<vmem>>, vector<1x16xf32>
    %88 = vector.broadcast %87 : vector<1x16xf32> to vector<16x16xf32>
    %89 = arith.addf %86, %88 : vector<16x16xf32>
    %c0_51 = arith.constant 0 : index
    %c0_52 = arith.constant 0 : index
    %90 = vector.load %arg5[%c0_51, %c0_52] : memref<16x16xf32, #tpu.memory_space<vmem>>, vector<16x16xf32>
    tpu.vector_store %arg5[%c0_51, %c0_52], %89 {strides = array<i32>} : memref<16x16xf32, #tpu.memory_space<vmem>>, vector<16x16xf32>,
    return
  }
}

</mosaic_0001>

<llo_original>
// kernel: attention_forward.1
$region0: #{attention_forward.1}
  #allocation0 [shape = 'u32[]', space=smem, size = 0x4, offset = 0x4, fixed_abs, tag = 'smem constant byte address 0x4 - core index']
  #allocation1 [shape = 'u32[72,128]{1,0:T(1,128)}', space=vmem, size = 0x9000, scoped, tag = 'internal scratch']
  %s0 = inlined_call_operand.vmem [shape: f32[16,16], index: 0, kind: input, shape index: {}]
  %s1 = inlined_call_operand.vmem [shape: f32[6,16,8], index: 1, kind: input, shape index: {}]
  %s2 = inlined_call_operand.vmem [shape: f32[6,1,8], index: 2, kind: input, shape index: {}]
  %s3 = inlined_call_operand.vmem [shape: f32[2,8,16], index: 3, kind: input, shape index: {}]
  %s4 = inlined_call_operand.vmem [shape: f32[1,16], index: 4, kind: input, shape index: {}]
  %s5 = inlined_call_operand.hbm [shape: f32[16,16], index: 5, kind: output, shape index: {}]
  %s6 = sld [smem:[#allocation0]]
  $region30: #{attention_forward.1} parent=0
    _
  %s8 = ssub.s32 1, %s6
  %s9 = scalar_select 0, %s8, %s6
  $region1: #{attention_forward.1} parent=0
    #allocation2 [shape = 'u8[8192]{0}', space=vmem, size = 0x2000, scoped, tag = 'output window, operand 0, single buffered']
    #allocation3 [shape = 's32[1]{0}', space=sflag, size = 0x4, scoped, tag = 'scoped memory for attention_forward.1']
    %10 = vsyncpa [#allocation3], 0
    // Predicated region
    $region2: #{attention_forward.1} parent=1 // pred_check
      _
    $region3: #{attention_forward.1} parent=1 // pred_check_branch
      %12 = sbr.rel (0) target = $region5
    $region4: #{attention_forward.1} parent=1 // pred_region
      _
    $region5: #{attention_forward.1} parent=1 // pred_fallthru
      _
    // Predicated region
    $region6: #{attention_forward.1} parent=1 // pred_check
      _
    $region7: #{attention_forward.1} parent=1 // pred_check_branch
      %14 = sbr.rel (0) target = $region9
    $region8: #{attention_forward.1} parent=1 // pred_region
      _
    $region9: #{attention_forward.1} parent=1 // pred_fallthru
      _
    // Predicated region
    $region10: #{attention_forward.1} parent=1 // pred_check
      _
    $region11: #{attention_forward.1} parent=1 // pred_check_branch
      %16 = sbr.rel (0) target = $region13
    $region12: #{attention_forward.1} parent=1 // pred_region
      _
    $region13: #{attention_forward.1} parent=1 // pred_fallthru
      _
    // Predicated region
    $region14: #{attention_forward.1} parent=1 // pred_check
      _
    $region15: #{attention_forward.1} parent=1 // pred_check_branch
      %18 = sbr.rel (0) target = $region17
    $region16: #{attention_forward.1} parent=1 // pred_region
      _
    $region17: #{attention_forward.1} parent=1 // pred_fallthru
      _
    // Predicated region
    $region18: #{attention_forward.1} parent=1 // pred_check
      _
    $region19: #{attention_forward.1} parent=1 // pred_check_branch
      %20 = sbr.rel (0) target = $region21
    $region20: #{attention_forward.1} parent=1 // pred_region
      _
    $region21: #{attention_forward.1} parent=1 // pred_fallthru
      _
    %v21 = vld [vmem:[%s0] sm:$0xff]
    %v22 = vld [vmem:[%s0 + $0x8] sm:$0xff]
    %v23 = vld [vmem:[%s1] sm:$0xff]
    %v24 = vld [vmem:[%s1 + $0x8] sm:$0xff]
    %v25 = vld [vmem:[%s2] sm:$0x1]
    %v27 = vperm.slane %v25, 0
    %vm29 = vcmask 130048
    %v31 = vsel %vm29, %v21, 0
    %v34 = vsel %vm29, %v22, 0
    %36 = vmatpush.msra.mxu0 0.0
    %37 = vmatpush.msra.mxu0 0.0
    %38 = vmatpush.msra.mxu0 0.0
    %39 = vmatpush.msra.mxu0 0.0
    %40 = vmatpush.msra.mxu0 0.0
    %41 = vmatpush.msra.mxu0 0.0
    %42 = vmatpush.msra.mxu0 0.0
    %43 = vmatpush.msra.mxu0 0.0
    %44 = vmatpush.msra.mxu0 0.0
    %45 = vmatpush.msra.mxu0 0.0
    %46 = vmatpush.msra.mxu0 0.0
    %47 = vmatpush.msra.mxu0 0.0
    %48 = vmatpush.msra.mxu0 0.0
    %49 = vmatpush.msra.mxu0 0.0
    %v50 = vand.u32 %v24, 4294901760
    %51 = vmatpush.msra.mxu0 %v50
    %v52 = vand.u32 %v23, 4294901760
    %53 = vmatpush.msra.mxu0 %v52
    %v54 = vand.u32 %v31, 4294901760
    %v55 = vsub.f32 %v31, %v54
    %v56 = vand.u32 %v55, 4294901760
    %v57 = vsub.f32 %v55, %v56
    %v58 = vand.u32 %v57, 4294901760
    %59 = vmatmul.f32.gmra.mxu0 %v58
    %v60 = vpop.f32.mrf.mxu0
    %v61 = vadd.f32 %v27, %v60
    %v62 = vand.u32 %v34, 4294901760
    %v63 = vsub.f32 %v34, %v62
    %v64 = vand.u32 %v63, 4294901760
    %v65 = vsub.f32 %v63, %v64
    %v66 = vand.u32 %v65, 4294901760
    %67 = vmatmul.f32.gmra.mxu0 %v66
    %v68 = vpop.f32.mrf.mxu0
    %v69 = vadd.f32 %v27, %v68
    %70 = vdwg.mxu0
    %71 = vmatpush.msra.mxu0 0.0
    %72 = vmatpush.msra.mxu0 0.0
    %73 = vmatpush.msra.mxu0 0.0
    %74 = vmatpush.msra.mxu0 0.0
    %75 = vmatpush.msra.mxu0 0.0
    %76 = vmatpush.msra.mxu0 0.0
    %77 = vmatpush.msra.mxu0 0.0
    %78 = vmatpush.msra.mxu0 0.0
    %79 = vmatpush.msra.mxu0 0.0
    %80 = vmatpush.msra.mxu0 0.0
    %81 = vmatpush.msra.mxu0 0.0
    %82 = vmatpush.msra.mxu0 0.0
    %83 = vmatpush.msra.mxu0 0.0
    %84 = vmatpush.msra.mxu0 0.0
    %v85 = vand.u32 %v24, 4294901760
    %v86 = vsub.f32 %v24, %v85
    %v87 = vand.u32 %v86, 4294901760
    %v88 = vsub.f32 %v86, %v87
    %v89 = vand.u32 %v88, 4294901760
    %90 = vmatpush.msra.mxu0 %v89
    %v91 = vand.u32 %v23, 4294901760
    %v92 = vsub.f32 %v23, %v91
    %v93 = vand.u32 %v92, 4294901760
    %v94 = vsub.f32 %v92, %v93
    %v95 = vand.u32 %v94, 4294901760
    %96 = vmatpush.msra.mxu0 %v95
    %v97 = vand.u32 %v31, 4294901760
    %98 = vmatmul.f32.gmra.mxu0 %v97
    %v99 = vpop.f32.mrf.mxu0
    %v100 = vadd.f32 %v61, %v99
    %v101 = vand.u32 %v34, 4294901760
    %102 = vmatmul.f32.gmra.mxu0 %v101
    %v103 = vpop.f32.mrf.mxu0
    %v104 = vadd.f32 %v69, %v103
    %105 = vdwg.mxu0
    %106 = vmatpush.msra.mxu0 0.0
    %107 = vmatpush.msra.mxu0 0.0
    %108 = vmatpush.msra.mxu0 0.0
    %109 = vmatpush.msra.mxu0 0.0
    %110 = vmatpush.msra.mxu0 0.0
    %111 = vmatpush.msra.mxu0 0.0
    %112 = vmatpush.msra.mxu0 0.0
    %113 = vmatpush.msra.mxu0 0.0
    %114 = vmatpush.msra.mxu0 0.0
    %115 = vmatpush.msra.mxu0 0.0
    %116 = vmatpush.msra.mxu0 0.0
    %117 = vmatpush.msra.mxu0 0.0
    %118 = vmatpush.msra.mxu0 0.0
    %119 = vmatpush.msra.mxu0 0.0
    %v120 = vand.u32 %v24, 4294901760
    %v121 = vsub.f32 %v24, %v120
    %122 = vmatpush.msra.mxu0 %v121
    %v123 = vand.u32 %v23, 4294901760
    %v124 = vsub.f32 %v23, %v123
    %125 = vmatpush.msra.mxu0 %v124
    %v126 = vand.u32 %v31, 4294901760
    %v127 = vsub.f32 %v31, %v126
    %128 = vmatmul.f32.gmra.mxu0 %v127
    %v129 = vpop.f32.mrf.mxu0
    %v130 = vadd.f32 %v100, %v129
    %v131 = vand.u32 %v34, 4294901760
    %v132 = vsub.f32 %v34, %v131
    %133 = vmatmul.f32.gmra.mxu0 %v132
    %v134 = vpop.f32.mrf.mxu0
    %v135 = vadd.f32 %v104, %v134
    %136 = vdwg.mxu0
    %137 = vmatpush.msra.mxu0 0.0
    %138 = vmatpush.msra.mxu0 0.0
    %139 = vmatpush.msra.mxu0 0.0
    %140 = vmatpush.msra.mxu0 0.0
    %141 = vmatpush.msra.mxu0 0.0
    %142 = vmatpush.msra.mxu0 0.0
    %143 = vmatpush.msra.mxu0 0.0
    %144 = vmatpush.msra.mxu0 0.0
    %145 = vmatpush.msra.mxu0 0.0
    %146 = vmatpush.msra.mxu0 0.0
    %147 = vmatpush.msra.mxu0 0.0
    %148 = vmatpush.msra.mxu0 0.0
    %149 = vmatpush.msra.mxu0 0.0
    %150 = vmatpush.msra.mxu0 0.0
    %v151 = vand.u32 %v24, 4294901760
    %152 = vmatpush.msra.mxu0 %v151
    %v153 = vand.u32 %v23, 4294901760
    %154 = vmatpush.msra.mxu0 %v153
    %v155 = vand.u32 %v31, 4294901760
    %v156 = vsub.f32 %v31, %v155
    %v157 = vand.u32 %v156, 4294901760
    %158 = vmatmul.f32.gmra.mxu0 %v157
    %v159 = vpop.f32.mrf.mxu0
    %v160 = vadd.f32 %v130, %v159
    %v161 = vand.u32 %v34, 4294901760
    %v162 = vsub.f32 %v34, %v161
    %v163 = vand.u32 %v162, 4294901760
    %164 = vmatmul.f32.gmra.mxu0 %v163
    %v165 = vpop.f32.mrf.mxu0
    %v166 = vadd.f32 %v135, %v165
    %167 = vdwg.mxu0
    %168 = vmatpush.msra.mxu0 0.0
    %169 = vmatpush.msra.mxu0 0.0
    %170 = vmatpush.msra.mxu0 0.0
    %171 = vmatpush.msra.mxu0 0.0
    %172 = vmatpush.msra.mxu0 0.0
    %173 = vmatpush.msra.mxu0 0.0
    %174 = vmatpush.msra.mxu0 0.0
    %175 = vmatpush.msra.mxu0 0.0
    %176 = vmatpush.msra.mxu0 0.0
    %177 = vmatpush.msra.mxu0 0.0
    %178 = vmatpush.msra.mxu0 0.0
    %179 = vmatpush.msra.mxu0 0.0
    %180 = vmatpush.msra.mxu0 0.0
    %181 = vmatpush.msra.mxu0 0.0
    %v182 = vand.u32 %v24, 4294901760
    %v183 = vsub.f32 %v24, %v182
    %v184 = vand.u32 %v183, 4294901760
    %185 = vmatpush.msra.mxu0 %v184
    %v186 = vand.u32 %v23, 4294901760
    %v187 = vsub.f32 %v23, %v186
    %v188 = vand.u32 %v187, 4294901760
    %189 = vmatpush.msra.mxu0 %v188
    %v190 = vand.u32 %v31, 4294901760
    %191 = vmatmul.f32.gmra.mxu0 %v190
    %v192 = vpop.f32.mrf.mxu0
    %v193 = vadd.f32 %v160, %v192
    %v194 = vand.u32 %v34, 4294901760
    %195 = vmatmul.f32.gmra.mxu0 %v194
    %v196 = vpop.f32.mrf.mxu0
    %v197 = vadd.f32 %v166, %v196
    %198 = vdwg.mxu0
    %199 = vmatpush.msra.mxu0 0.0
    %200 = vmatpush.msra.mxu0 0.0
    %201 = vmatpush.msra.mxu0 0.0
    %202 = vmatpush.msra.mxu0 0.0
    %203 = vmatpush.msra.mxu0 0.0
    %204 = vmatpush.msra.mxu0 0.0
    %205 = vmatpush.msra.mxu0 0.0
    %206 = vmatpush.msra.mxu0 0.0
    %207 = vmatpush.msra.mxu0 0.0
    %208 = vmatpush.msra.mxu0 0.0
    %209 = vmatpush.msra.mxu0 0.0
    %210 = vmatpush.msra.mxu0 0.0
    %211 = vmatpush.msra.mxu0 0.0
    %212 = vmatpush.msra.mxu0 0.0
    %v213 = vand.u32 %v24, 4294901760
    %214 = vmatpush.msra.mxu0 %v213
    %v215 = vand.u32 %v23, 4294901760
    %216 = vmatpush.msra.mxu0 %v215
    %v217 = vand.u32 %v31, 4294901760
    %218 = vmatmul.f32.gmra.mxu0 %v217
    %v219 = vpop.f32.mrf.mxu0
    %v220 = vadd.f32 %v193, %v219
    %v221 = vand.u32 %v34, 4294901760
    %222 = vmatmul.f32.gmra.mxu0 %v221
    %v223 = vpop.f32.mrf.mxu0
    %v224 = vadd.f32 %v197, %v223
    %225 = vdwg.mxu0
    %s226 = scalar_lea.vmem %s1, 16
    %v227 = vld [vmem:[%s226] sm:$0xff]
    %v228 = vld [vmem:[%s226 + $0x8] sm:$0xff]
    %s229 = scalar_lea.vmem %s2, 1
    %v230 = vld [vmem:[%s229] sm:$0x1]
    %v232 = vperm.slane %v230, 0
    %234 = vmatpush.msra.mxu0 0.0
    %235 = vmatpush.msra.mxu0 0.0
    %236 = vmatpush.msra.mxu0 0.0
    %237 = vmatpush.msra.mxu0 0.0
    %238 = vmatpush.msra.mxu0 0.0
    %239 = vmatpush.msra.mxu0 0.0
    %240 = vmatpush.msra.mxu0 0.0
    %241 = vmatpush.msra.mxu0 0.0
    %242 = vmatpush.msra.mxu0 0.0
    %243 = vmatpush.msra.mxu0 0.0
    %244 = vmatpush.msra.mxu0 0.0
    %245 = vmatpush.msra.mxu0 0.0
    %246 = vmatpush.msra.mxu0 0.0
    %247 = vmatpush.msra.mxu0 0.0
    %v248 = vand.u32 %v228, 4294901760
    %249 = vmatpush.msra.mxu0 %v248
    %v250 = vand.u32 %v227, 4294901760
    %251 = vmatpush.msra.mxu0 %v250
    %v252 = vand.u32 %v31, 4294901760
    %v253 = vsub.f32 %v31, %v252
    %v254 = vand.u32 %v253, 4294901760
    %v255 = vsub.f32 %v253, %v254
    %v256 = vand.u32 %v255, 4294901760
    %257 = vmatmul.f32.gmra.mxu0 %v256
    %v258 = vpop.f32.mrf.mxu0
    %v259 = vadd.f32 %v232, %v258
    %v260 = vand.u32 %v34, 4294901760
    %v261 = vsub.f32 %v34, %v260
    %v262 = vand.u32 %v261, 4294901760
    %v263 = vsub.f32 %v261, %v262
    %v264 = vand.u32 %v263, 4294901760
    %265 = vmatmul.f32.gmra.mxu0 %v264
    %v266 = vpop.f32.mrf.mxu0
    %v267 = vadd.f32 %v232, %v266
    %268 = vdwg.mxu0
    %269 = vmatpush.msra.mxu0 0.0
    %270 = vmatpush.msra.mxu0 0.0
    %271 = vmatpush.msra.mxu0 0.0
    %272 = vmatpush.msra.mxu0 0.0
    %273 = vmatpush.msra.mxu0 0.0
    %274 = vmatpush.msra.mxu0 0.0
    %275 = vmatpush.msra.mxu0 0.0
    %276 = vmatpush.msra.mxu0 0.0
    %277 = vmatpush.msra.mxu0 0.0
    %278 = vmatpush.msra.mxu0 0.0
    %279 = vmatpush.msra.mxu0 0.0
    %280 = vmatpush.msra.mxu0 0.0
    %281 = vmatpush.msra.mxu0 0.0
    %282 = vmatpush.msra.mxu0 0.0
    %v283 = vand.u32 %v228, 4294901760
    %v284 = vsub.f32 %v228, %v283
    %v285 = vand.u32 %v284, 4294901760
    %v286 = vsub.f32 %v284, %v285
    %v287 = vand.u32 %v286, 4294901760
    %288 = vmatpush.msra.mxu0 %v287
    %v289 = vand.u32 %v227, 4294901760
    %v290 = vsub.f32 %v227, %v289
    %v291 = vand.u32 %v290, 4294901760
    %v292 = vsub.f32 %v290, %v291
    %v293 = vand.u32 %v292, 4294901760
    %294 = vmatpush.msra.mxu0 %v293
    %v295 = vand.u32 %v31, 4294901760
    %296 = vmatmul.f32.gmra.mxu0 %v295
    %v297 = vpop.f32.mrf.mxu0
    %v298 = vadd.f32 %v259, %v297
    %v299 = vand.u32 %v34, 4294901760
    %300 = vmatmul.f32.gmra.mxu0 %v299
    %v301 = vpop.f32.mrf.mxu0
    %v302 = vadd.f32 %v267, %v301
    %303 = vdwg.mxu0
    %304 = vmatpush.msra.mxu0 0.0
    %305 = vmatpush.msra.mxu0 0.0
    %306 = vmatpush.msra.mxu0 0.0
    %307 = vmatpush.msra.mxu0 0.0
    %308 = vmatpush.msra.mxu0 0.0
    %309 = vmatpush.msra.mxu0 0.0
    %310 = vmatpush.msra.mxu0 0.0
    %311 = vmatpush.msra.mxu0 0.0
    %312 = vmatpush.msra.mxu0 0.0
    %313 = vmatpush.msra.mxu0 0.0
    %314 = vmatpush.msra.mxu0 0.0
    %315 = vmatpush.msra.mxu0 0.0
    %316 = vmatpush.msra.mxu0 0.0
    %317 = vmatpush.msra.mxu0 0.0
    %v318 = vand.u32 %v228, 4294901760
    %v319 = vsub.f32 %v228, %v318
    %320 = vmatpush.msra.mxu0 %v319
    %v321 = vand.u32 %v227, 4294901760
    %v322 = vsub.f32 %v227, %v321
    %323 = vmatpush.msra.mxu0 %v322
    %v324 = vand.u32 %v31, 4294901760
    %v325 = vsub.f32 %v31, %v324
    %326 = vmatmul.f32.gmra.mxu0 %v325
    %v327 = vpop.f32.mrf.mxu0
    %v328 = vadd.f32 %v298, %v327
    %v329 = vand.u32 %v34, 4294901760
    %v330 = vsub.f32 %v34, %v329
    %331 = vmatmul.f32.gmra.mxu0 %v330
    %v332 = vpop.f32.mrf.mxu0
    %v333 = vadd.f32 %v302, %v332
    %334 = vdwg.mxu0
    %335 = vmatpush.msra.mxu0 0.0
    %336 = vmatpush.msra.mxu0 0.0
    %337 = vmatpush.msra.mxu0 0.0
    %338 = vmatpush.msra.mxu0 0.0
    %339 = vmatpush.msra.mxu0 0.0
    %340 = vmatpush.msra.mxu0 0.0
    %341 = vmatpush.msra.mxu0 0.0
    %342 = vmatpush.msra.mxu0 0.0
    %343 = vmatpush.msra.mxu0 0.0
    %344 = vmatpush.msra.mxu0 0.0
    %345 = vmatpush.msra.mxu0 0.0
    %346 = vmatpush.msra.mxu0 0.0
    %347 = vmatpush.msra.mxu0 0.0
    %348 = vmatpush.msra.mxu0 0.0
    %v349 = vand.u32 %v228, 4294901760
    %350 = vmatpush.msra.mxu0 %v349
    %v351 = vand.u32 %v227, 4294901760
    %352 = vmatpush.msra.mxu0 %v351
    %v353 = vand.u32 %v31, 4294901760
    %v354 = vsub.f32 %v31, %v353
    %v355 = vand.u32 %v354, 4294901760
    %356 = vmatmul.f32.gmra.mxu0 %v355
    %v357 = vpop.f32.mrf.mxu0
    %v358 = vadd.f32 %v328, %v357
    %v359 = vand.u32 %v34, 4294901760
    %v360 = vsub.f32 %v34, %v359
    %v361 = vand.u32 %v360, 4294901760
    %362 = vmatmul.f32.gmra.mxu0 %v361
    %v363 = vpop.f32.mrf.mxu0
    %v364 = vadd.f32 %v333, %v363
    %365 = vdwg.mxu0
    %366 = vmatpush.msra.mxu0 0.0
    %367 = vmatpush.msra.mxu0 0.0
    %368 = vmatpush.msra.mxu0 0.0
    %369 = vmatpush.msra.mxu0 0.0
    %370 = vmatpush.msra.mxu0 0.0
    %371 = vmatpush.msra.mxu0 0.0
    %372 = vmatpush.msra.mxu0 0.0
    %373 = vmatpush.msra.mxu0 0.0
    %374 = vmatpush.msra.mxu0 0.0
    %375 = vmatpush.msra.mxu0 0.0
    %376 = vmatpush.msra.mxu0 0.0
    %377 = vmatpush.msra.mxu0 0.0
    %378 = vmatpush.msra.mxu0 0.0
    %379 = vmatpush.msra.mxu0 0.0
    %v380 = vand.u32 %v228, 4294901760
    %v381 = vsub.f32 %v228, %v380
    %v382 = vand.u32 %v381, 4294901760
    %383 = vmatpush.msra.mxu0 %v382
    %v384 = vand.u32 %v227, 4294901760
    %v385 = vsub.f32 %v227, %v384
    %v386 = vand.u32 %v385, 4294901760
    %387 = vmatpush.msra.mxu0 %v386
    %v388 = vand.u32 %v31, 4294901760
    %389 = vmatmul.f32.gmra.mxu0 %v388
    %v390 = vpop.f32.mrf.mxu0
    %v391 = vadd.f32 %v358, %v390
    %v392 = vand.u32 %v34, 4294901760
    %393 = vmatmul.f32.gmra.mxu0 %v392
    %v394 = vpop.f32.mrf.mxu0
    %v395 = vadd.f32 %v364, %v394
    %396 = vdwg.mxu0
    %397 = vmatpush.msra.mxu0 0.0
    %398 = vmatpush.msra.mxu0 0.0
    %399 = vmatpush.msra.mxu0 0.0
    %400 = vmatpush.msra.mxu0 0.0
    %401 = vmatpush.msra.mxu0 0.0
    %402 = vmatpush.msra.mxu0 0.0
    %403 = vmatpush.msra.mxu0 0.0
    %404 = vmatpush.msra.mxu0 0.0
    %405 = vmatpush.msra.mxu0 0.0
    %406 = vmatpush.msra.mxu0 0.0
    %407 = vmatpush.msra.mxu0 0.0
    %408 = vmatpush.msra.mxu0 0.0
    %409 = vmatpush.msra.mxu0 0.0
    %410 = vmatpush.msra.mxu0 0.0
    %v411 = vand.u32 %v228, 4294901760
    %412 = vmatpush.msra.mxu0 %v411
    %v413 = vand.u32 %v227, 4294901760
    %414 = vmatpush.msra.mxu0 %v413
    %v415 = vand.u32 %v31, 4294901760
    %416 = vmatmul.f32.gmra.mxu0 %v415
    %v417 = vpop.f32.mrf.mxu0
    %v418 = vadd.f32 %v391, %v417
    %v419 = vand.u32 %v34, 4294901760
    %420 = vmatmul.f32.gmra.mxu0 %v419
    %v421 = vpop.f32.mrf.mxu0
    %v422 = vadd.f32 %v395, %v421
    %423 = vdwg.mxu0
    %s424 = scalar_lea.vmem %s1, 32
    %v425 = vld [vmem:[%s424] sm:$0xff]
    %v426 = vld [vmem:[%s424 + $0x8] sm:$0xff]
    %s427 = scalar_lea.vmem %s2, 2
    %v428 = vld [vmem:[%s427] sm:$0x1]
    %v430 = vperm.slane %v428, 0
    %432 = vmatpush.msra.mxu0 0.0
    %433 = vmatpush.msra.mxu0 0.0
    %434 = vmatpush.msra.mxu0 0.0
    %435 = vmatpush.msra.mxu0 0.0
    %436 = vmatpush.msra.mxu0 0.0
    %437 = vmatpush.msra.mxu0 0.0
    %438 = vmatpush.msra.mxu0 0.0
    %439 = vmatpush.msra.mxu0 0.0
    %440 = vmatpush.msra.mxu0 0.0
    %441 = vmatpush.msra.mxu0 0.0
    %442 = vmatpush.msra.mxu0 0.0
    %443 = vmatpush.msra.mxu0 0.0
    %444 = vmatpush.msra.mxu0 0.0
    %445 = vmatpush.msra.mxu0 0.0
    %v446 = vand.u32 %v426, 4294901760
    %447 = vmatpush.msra.mxu0 %v446
    %v448 = vand.u32 %v425, 4294901760
    %449 = vmatpush.msra.mxu0 %v448
    %v450 = vand.u32 %v31, 4294901760
    %v451 = vsub.f32 %v31, %v450
    %v452 = vand.u32 %v451, 4294901760
    %v453 = vsub.f32 %v451, %v452
    %v454 = vand.u32 %v453, 4294901760
    %455 = vmatmul.f32.gmra.mxu0 %v454
    %v456 = vpop.f32.mrf.mxu0
    %v457 = vadd.f32 %v430, %v456
    %v458 = vand.u32 %v34, 4294901760
    %v459 = vsub.f32 %v34, %v458
    %v460 = vand.u32 %v459, 4294901760
    %v461 = vsub.f32 %v459, %v460
    %v462 = vand.u32 %v461, 4294901760
    %463 = vmatmul.f32.gmra.mxu0 %v462
    %v464 = vpop.f32.mrf.mxu0
    %v465 = vadd.f32 %v430, %v464
    %466 = vdwg.mxu0
    %467 = vmatpush.msra.mxu0 0.0
    %468 = vmatpush.msra.mxu0 0.0
    %469 = vmatpush.msra.mxu0 0.0
    %470 = vmatpush.msra.mxu0 0.0
    %471 = vmatpush.msra.mxu0 0.0
    %472 = vmatpush.msra.mxu0 0.0
    %473 = vmatpush.msra.mxu0 0.0
    %474 = vmatpush.msra.mxu0 0.0
    %475 = vmatpush.msra.mxu0 0.0
    %476 = vmatpush.msra.mxu0 0.0
    %477 = vmatpush.msra.mxu0 0.0
    %478 = vmatpush.msra.mxu0 0.0
    %479 = vmatpush.msra.mxu0 0.0
    %480 = vmatpush.msra.mxu0 0.0
    %v481 = vand.u32 %v426, 4294901760
    %v482 = vsub.f32 %v426, %v481
    %v483 = vand.u32 %v482, 4294901760
    %v484 = vsub.f32 %v482, %v483
    %v485 = vand.u32 %v484, 4294901760
    %486 = vmatpush.msra.mxu0 %v485
    %v487 = vand.u32 %v425, 4294901760
    %v488 = vsub.f32 %v425, %v487
    %v489 = vand.u32 %v488, 4294901760
    %v490 = vsub.f32 %v488, %v489
    %v491 = vand.u32 %v490, 4294901760
    %492 = vmatpush.msra.mxu0 %v491
    %v493 = vand.u32 %v31, 4294901760
    %494 = vmatmul.f32.gmra.mxu0 %v493
    %v495 = vpop.f32.mrf.mxu0
    %v496 = vadd.f32 %v457, %v495
    %v497 = vand.u32 %v34, 4294901760
    %498 = vmatmul.f32.gmra.mxu0 %v497
    %v499 = vpop.f32.mrf.mxu0
    %v500 = vadd.f32 %v465, %v499
    %501 = vdwg.mxu0
    %502 = vmatpush.msra.mxu0 0.0
    %503 = vmatpush.msra.mxu0 0.0
    %504 = vmatpush.msra.mxu0 0.0
    %505 = vmatpush.msra.mxu0 0.0
    %506 = vmatpush.msra.mxu0 0.0
    %507 = vmatpush.msra.mxu0 0.0
    %508 = vmatpush.msra.mxu0 0.0
    %509 = vmatpush.msra.mxu0 0.0
    %510 = vmatpush.msra.mxu0 0.0
    %511 = vmatpush.msra.mxu0 0.0
    %512 = vmatpush.msra.mxu0 0.0
    %513 = vmatpush.msra.mxu0 0.0
    %514 = vmatpush.msra.mxu0 0.0
    %515 = vmatpush.msra.mxu0 0.0
    %v516 = vand.u32 %v426, 4294901760
    %v517 = vsub.f32 %v426, %v516
    %518 = vmatpush.msra.mxu0 %v517
    %v519 = vand.u32 %v425, 4294901760
    %v520 = vsub.f32 %v425, %v519
    %521 = vmatpush.msra.mxu0 %v520
    %v522 = vand.u32 %v31, 4294901760
    %v523 = vsub.f32 %v31, %v522
    %524 = vmatmul.f32.gmra.mxu0 %v523
    %v525 = vpop.f32.mrf.mxu0
    %v526 = vadd.f32 %v496, %v525
    %v527 = vand.u32 %v34, 4294901760
    %v528 = vsub.f32 %v34, %v527
    %529 = vmatmul.f32.gmra.mxu0 %v528
    %v530 = vpop.f32.mrf.mxu0
    %v531 = vadd.f32 %v500, %v530
    %532 = vdwg.mxu0
    %533 = vmatpush.msra.mxu0 0.0
    %534 = vmatpush.msra.mxu0 0.0
    %535 = vmatpush.msra.mxu0 0.0
    %536 = vmatpush.msra.mxu0 0.0
    %537 = vmatpush.msra.mxu0 0.0
    %538 = vmatpush.msra.mxu0 0.0
    %539 = vmatpush.msra.mxu0 0.0
    %540 = vmatpush.msra.mxu0 0.0
    %541 = vmatpush.msra.mxu0 0.0
    %542 = vmatpush.msra.mxu0 0.0
    %543 = vmatpush.msra.mxu0 0.0
    %544 = vmatpush.msra.mxu0 0.0
    %545 = vmatpush.msra.mxu0 0.0
    %546 = vmatpush.msra.mxu0 0.0
    %v547 = vand.u32 %v426, 4294901760
    %548 = vmatpush.msra.mxu0 %v547
    %v549 = vand.u32 %v425, 4294901760
    %550 = vmatpush.msra.mxu0 %v549
    %v551 = vand.u32 %v31, 4294901760
    %v552 = vsub.f32 %v31, %v551
    %v553 = vand.u32 %v552, 4294901760
    %554 = vmatmul.f32.gmra.mxu0 %v553
    %v555 = vpop.f32.mrf.mxu0
    %v556 = vadd.f32 %v526, %v555
    %v557 = vand.u32 %v34, 4294901760
    %v558 = vsub.f32 %v34, %v557
    %v559 = vand.u32 %v558, 4294901760
    %560 = vmatmul.f32.gmra.mxu0 %v559
    %v561 = vpop.f32.mrf.mxu0
    %v562 = vadd.f32 %v531, %v561
    %563 = vdwg.mxu0
    %564 = vmatpush.msra.mxu0 0.0
    %565 = vmatpush.msra.mxu0 0.0
    %566 = vmatpush.msra.mxu0 0.0
    %567 = vmatpush.msra.mxu0 0.0
    %568 = vmatpush.msra.mxu0 0.0
    %569 = vmatpush.msra.mxu0 0.0
    %570 = vmatpush.msra.mxu0 0.0
    %571 = vmatpush.msra.mxu0 0.0
    %572 = vmatpush.msra.mxu0 0.0
    %573 = vmatpush.msra.mxu0 0.0
    %574 = vmatpush.msra.mxu0 0.0
    %575 = vmatpush.msra.mxu0 0.0
    %576 = vmatpush.msra.mxu0 0.0
    %577 = vmatpush.msra.mxu0 0.0
    %v578 = vand.u32 %v426, 4294901760
    %v579 = vsub.f32 %v426, %v578
    %v580 = vand.u32 %v579, 4294901760
    %581 = vmatpush.msra.mxu0 %v580
    %v582 = vand.u32 %v425, 4294901760
    %v583 = vsub.f32 %v425, %v582
    %v584 = vand.u32 %v583, 4294901760
    %585 = vmatpush.msra.mxu0 %v584
    %v586 = vand.u32 %v31, 4294901760
    %587 = vmatmul.f32.gmra.mxu0 %v586
    %v588 = vpop.f32.mrf.mxu0
    %v589 = vadd.f32 %v556, %v588
    %v590 = vand.u32 %v34, 4294901760
    %591 = vmatmul.f32.gmra.mxu0 %v590
    %v592 = vpop.f32.mrf.mxu0
    %v593 = vadd.f32 %v562, %v592
    %594 = vdwg.mxu0
    %595 = vmatpush.msra.mxu0 0.0
    %596 = vmatpush.msra.mxu0 0.0
    %597 = vmatpush.msra.mxu0 0.0
    %598 = vmatpush.msra.mxu0 0.0
    %599 = vmatpush.msra.mxu0 0.0
    %600 = vmatpush.msra.mxu0 0.0
    %601 = vmatpush.msra.mxu0 0.0
    %602 = vmatpush.msra.mxu0 0.0
    %603 = vmatpush.msra.mxu0 0.0
    %604 = vmatpush.msra.mxu0 0.0
    %605 = vmatpush.msra.mxu0 0.0
    %606 = vmatpush.msra.mxu0 0.0
    %607 = vmatpush.msra.mxu0 0.0
    %608 = vmatpush.msra.mxu0 0.0
    %v609 = vand.u32 %v426, 4294901760
    %610 = vmatpush.msra.mxu0 %v609
    %v611 = vand.u32 %v425, 4294901760
    %612 = vmatpush.msra.mxu0 %v611
    %v613 = vand.u32 %v31, 4294901760
    %614 = vmatmul.f32.gmra.mxu0 %v613
    %v615 = vpop.f32.mrf.mxu0
    %v616 = vadd.f32 %v589, %v615
    %v617 = vand.u32 %v34, 4294901760
    %618 = vmatmul.f32.gmra.mxu0 %v617
    %v619 = vpop.f32.mrf.mxu0
    %v620 = vadd.f32 %v593, %v619
    %621 = vdwg.mxu0
    %s622 = scalar_lea.vmem %s1, 48
    %v623 = vld [vmem:[%s622] sm:$0xff]
    %v624 = vld [vmem:[%s622 + $0x8] sm:$0xff]
    %s625 = scalar_lea.vmem %s2, 3
    %v626 = vld [vmem:[%s625] sm:$0x1]
    %v628 = vperm.slane %v626, 0
    %630 = vmatpush.msra.mxu0 0.0
    %631 = vmatpush.msra.mxu0 0.0
    %632 = vmatpush.msra.mxu0 0.0
    %633 = vmatpush.msra.mxu0 0.0
    %634 = vmatpush.msra.mxu0 0.0
    %635 = vmatpush.msra.mxu0 0.0
    %636 = vmatpush.msra.mxu0 0.0
    %637 = vmatpush.msra.mxu0 0.0
    %638 = vmatpush.msra.mxu0 0.0
    %639 = vmatpush.msra.mxu0 0.0
    %640 = vmatpush.msra.mxu0 0.0
    %641 = vmatpush.msra.mxu0 0.0
    %642 = vmatpush.msra.mxu0 0.0
    %643 = vmatpush.msra.mxu0 0.0
    %v644 = vand.u32 %v624, 4294901760
    %645 = vmatpush.msra.mxu0 %v644
    %v646 = vand.u32 %v623, 4294901760
    %647 = vmatpush.msra.mxu0 %v646
    %v648 = vand.u32 %v31, 4294901760
    %v649 = vsub.f32 %v31, %v648
    %v650 = vand.u32 %v649, 4294901760
    %v651 = vsub.f32 %v649, %v650
    %v652 = vand.u32 %v651, 4294901760
    %653 = vmatmul.f32.gmra.mxu0 %v652
    %v654 = vpop.f32.mrf.mxu0
    %v655 = vadd.f32 %v628, %v654
    %v656 = vand.u32 %v34, 4294901760
    %v657 = vsub.f32 %v34, %v656
    %v658 = vand.u32 %v657, 4294901760
    %v659 = vsub.f32 %v657, %v658
    %v660 = vand.u32 %v659, 4294901760
    %661 = vmatmul.f32.gmra.mxu0 %v660
    %v662 = vpop.f32.mrf.mxu0
    %v663 = vadd.f32 %v628, %v662
    %664 = vdwg.mxu0
    %665 = vmatpush.msra.mxu0 0.0
    %666 = vmatpush.msra.mxu0 0.0
    %667 = vmatpush.msra.mxu0 0.0
    %668 = vmatpush.msra.mxu0 0.0
    %669 = vmatpush.msra.mxu0 0.0
    %670 = vmatpush.msra.mxu0 0.0
    %671 = vmatpush.msra.mxu0 0.0
    %672 = vmatpush.msra.mxu0 0.0
    %673 = vmatpush.msra.mxu0 0.0
    %674 = vmatpush.msra.mxu0 0.0
    %675 = vmatpush.msra.mxu0 0.0
    %676 = vmatpush.msra.mxu0 0.0
    %677 = vmatpush.msra.mxu0 0.0
    %678 = vmatpush.msra.mxu0 0.0
    %v679 = vand.u32 %v624, 4294901760
    %v680 = vsub.f32 %v624, %v679
    %v681 = vand.u32 %v680, 4294901760
    %v682 = vsub.f32 %v680, %v681
    %v683 = vand.u32 %v682, 4294901760
    %684 = vmatpush.msra.mxu0 %v683
    %v685 = vand.u32 %v623, 4294901760
    %v686 = vsub.f32 %v623, %v685
    %v687 = vand.u32 %v686, 4294901760
    %v688 = vsub.f32 %v686, %v687
    %v689 = vand.u32 %v688, 4294901760
    %690 = vmatpush.msra.mxu0 %v689
    %v691 = vand.u32 %v31, 4294901760
    %692 = vmatmul.f32.gmra.mxu0 %v691
    %v693 = vpop.f32.mrf.mxu0
    %v694 = vadd.f32 %v655, %v693
    %v695 = vand.u32 %v34, 4294901760
    %696 = vmatmul.f32.gmra.mxu0 %v695
    %v697 = vpop.f32.mrf.mxu0
    %v698 = vadd.f32 %v663, %v697
    %699 = vdwg.mxu0
    %700 = vmatpush.msra.mxu0 0.0
    %701 = vmatpush.msra.mxu0 0.0
    %702 = vmatpush.msra.mxu0 0.0
    %703 = vmatpush.msra.mxu0 0.0
    %704 = vmatpush.msra.mxu0 0.0
    %705 = vmatpush.msra.mxu0 0.0
    %706 = vmatpush.msra.mxu0 0.0
    %707 = vmatpush.msra.mxu0 0.0
    %708 = vmatpush.msra.mxu0 0.0
    %709 = vmatpush.msra.mxu0 0.0
    %710 = vmatpush.msra.mxu0 0.0
    %711 = vmatpush.msra.mxu0 0.0
    %712 = vmatpush.msra.mxu0 0.0
    %713 = vmatpush.msra.mxu0 0.0
    %v714 = vand.u32 %v624, 4294901760
    %v715 = vsub.f32 %v624, %v714
    %716 = vmatpush.msra.mxu0 %v715
    %v717 = vand.u32 %v623, 4294901760
    %v718 = vsub.f32 %v623, %v717
    %719 = vmatpush.msra.mxu0 %v718
    %v720 = vand.u32 %v31, 4294901760
    %v721 = vsub.f32 %v31, %v720
    %722 = vmatmul.f32.gmra.mxu0 %v721
    %v723 = vpop.f32.mrf.mxu0
    %v724 = vadd.f32 %v694, %v723
    %v725 = vand.u32 %v34, 4294901760
    %v726 = vsub.f32 %v34, %v725
    %727 = vmatmul.f32.gmra.mxu0 %v726
    %v728 = vpop.f32.mrf.mxu0
    %v729 = vadd.f32 %v698, %v728
    %730 = vdwg.mxu0
    %731 = vmatpush.msra.mxu0 0.0
    %732 = vmatpush.msra.mxu0 0.0
    %733 = vmatpush.msra.mxu0 0.0
    %734 = vmatpush.msra.mxu0 0.0
    %735 = vmatpush.msra.mxu0 0.0
    %736 = vmatpush.msra.mxu0 0.0
    %737 = vmatpush.msra.mxu0 0.0
    %738 = vmatpush.msra.mxu0 0.0
    %739 = vmatpush.msra.mxu0 0.0
    %740 = vmatpush.msra.mxu0 0.0
    %741 = vmatpush.msra.mxu0 0.0
    %742 = vmatpush.msra.mxu0 0.0
    %743 = vmatpush.msra.mxu0 0.0
    %744 = vmatpush.msra.mxu0 0.0
    %v745 = vand.u32 %v624, 4294901760
    %746 = vmatpush.msra.mxu0 %v745
    %v747 = vand.u32 %v623, 4294901760
    %748 = vmatpush.msra.mxu0 %v747
    %v749 = vand.u32 %v31, 4294901760
    %v750 = vsub.f32 %v31, %v749
    %v751 = vand.u32 %v750, 4294901760
    %752 = vmatmul.f32.gmra.mxu0 %v751
    %v753 = vpop.f32.mrf.mxu0
    %v754 = vadd.f32 %v724, %v753
    %v755 = vand.u32 %v34, 4294901760
    %v756 = vsub.f32 %v34, %v755
    %v757 = vand.u32 %v756, 4294901760
    %758 = vmatmul.f32.gmra.mxu0 %v757
    %v759 = vpop.f32.mrf.mxu0
    %v760 = vadd.f32 %v729, %v759
    %761 = vdwg.mxu0
    %762 = vmatpush.msra.mxu0 0.0
    %763 = vmatpush.msra.mxu0 0.0
    %764 = vmatpush.msra.mxu0 0.0
    %765 = vmatpush.msra.mxu0 0.0
    %766 = vmatpush.msra.mxu0 0.0
    %767 = vmatpush.msra.mxu0 0.0
    %768 = vmatpush.msra.mxu0 0.0
    %769 = vmatpush.msra.mxu0 0.0
    %770 = vmatpush.msra.mxu0 0.0
    %771 = vmatpush.msra.mxu0 0.0
    %772 = vmatpush.msra.mxu0 0.0
    %773 = vmatpush.msra.mxu0 0.0
    %774 = vmatpush.msra.mxu0 0.0
    %775 = vmatpush.msra.mxu0 0.0
    %v776 = vand.u32 %v624, 4294901760
    %v777 = vsub.f32 %v624, %v776
    %v778 = vand.u32 %v777, 4294901760
    %779 = vmatpush.msra.mxu0 %v778
    %v780 = vand.u32 %v623, 4294901760
    %v781 = vsub.f32 %v623, %v780
    %v782 = vand.u32 %v781, 4294901760
    %783 = vmatpush.msra.mxu0 %v782
    %v784 = vand.u32 %v31, 4294901760
    %785 = vmatmul.f32.gmra.mxu0 %v784
    %v786 = vpop.f32.mrf.mxu0
    %v787 = vadd.f32 %v754, %v786
    %v788 = vand.u32 %v34, 4294901760
    %789 = vmatmul.f32.gmra.mxu0 %v788
    %v790 = vpop.f32.mrf.mxu0
    %v791 = vadd.f32 %v760, %v790
    %792 = vdwg.mxu0
    %793 = vmatpush.msra.mxu0 0.0
    %794 = vmatpush.msra.mxu0 0.0
    %795 = vmatpush.msra.mxu0 0.0
    %796 = vmatpush.msra.mxu0 0.0
    %797 = vmatpush.msra.mxu0 0.0
    %798 = vmatpush.msra.mxu0 0.0
    %799 = vmatpush.msra.mxu0 0.0
    %800 = vmatpush.msra.mxu0 0.0
    %801 = vmatpush.msra.mxu0 0.0
    %802 = vmatpush.msra.mxu0 0.0
    %803 = vmatpush.msra.mxu0 0.0
    %804 = vmatpush.msra.mxu0 0.0
    %805 = vmatpush.msra.mxu0 0.0
    %806 = vmatpush.msra.mxu0 0.0
    %v807 = vand.u32 %v624, 4294901760
    %808 = vmatpush.msra.mxu0 %v807
    %v809 = vand.u32 %v623, 4294901760
    %810 = vmatpush.msra.mxu0 %v809
    %v811 = vand.u32 %v31, 4294901760
    %812 = vmatmul.f32.gmra.mxu0 %v811
    %v813 = vpop.f32.mrf.mxu0
    %v814 = vadd.f32 %v787, %v813
    %v815 = vand.u32 %v34, 4294901760
    %816 = vmatmul.f32.gmra.mxu0 %v815
    %v817 = vpop.f32.mrf.mxu0
    %v818 = vadd.f32 %v791, %v817
    %819 = vdwg.mxu0
    %s820 = scalar_lea.vmem %s1, 64
    %v821 = vld [vmem:[%s820] sm:$0xff]
    %v822 = vld [vmem:[%s820 + $0x8] sm:$0xff]
    %s823 = scalar_lea.vmem %s2, 4
    %v824 = vld [vmem:[%s823] sm:$0x1]
    %v826 = vperm.slane %v824, 0
    %828 = vmatpush.msra.mxu0 0.0
    %829 = vmatpush.msra.mxu0 0.0
    %830 = vmatpush.msra.mxu0 0.0
    %831 = vmatpush.msra.mxu0 0.0
    %832 = vmatpush.msra.mxu0 0.0
    %833 = vmatpush.msra.mxu0 0.0
    %834 = vmatpush.msra.mxu0 0.0
    %835 = vmatpush.msra.mxu0 0.0
    %836 = vmatpush.msra.mxu0 0.0
    %837 = vmatpush.msra.mxu0 0.0
    %838 = vmatpush.msra.mxu0 0.0
    %839 = vmatpush.msra.mxu0 0.0
    %840 = vmatpush.msra.mxu0 0.0
    %841 = vmatpush.msra.mxu0 0.0
    %v842 = vand.u32 %v822, 4294901760
    %843 = vmatpush.msra.mxu0 %v842
    %v844 = vand.u32 %v821, 4294901760
    %845 = vmatpush.msra.mxu0 %v844
    %v846 = vand.u32 %v31, 4294901760
    %v847 = vsub.f32 %v31, %v846
    %v848 = vand.u32 %v847, 4294901760
    %v849 = vsub.f32 %v847, %v848
    %v850 = vand.u32 %v849, 4294901760
    %851 = vmatmul.f32.gmra.mxu0 %v850
    %v852 = vpop.f32.mrf.mxu0
    %v853 = vadd.f32 %v826, %v852
    %v854 = vand.u32 %v34, 4294901760
    %v855 = vsub.f32 %v34, %v854
    %v856 = vand.u32 %v855, 4294901760
    %v857 = vsub.f32 %v855, %v856
    %v858 = vand.u32 %v857, 4294901760
    %859 = vmatmul.f32.gmra.mxu0 %v858
    %v860 = vpop.f32.mrf.mxu0
    %v861 = vadd.f32 %v826, %v860
    %862 = vdwg.mxu0
    %863 = vmatpush.msra.mxu0 0.0
    %864 = vmatpush.msra.mxu0 0.0
    %865 = vmatpush.msra.mxu0 0.0
    %866 = vmatpush.msra.mxu0 0.0
    %867 = vmatpush.msra.mxu0 0.0
    %868 = vmatpush.msra.mxu0 0.0
    %869 = vmatpush.msra.mxu0 0.0
    %870 = vmatpush.msra.mxu0 0.0
    %871 = vmatpush.msra.mxu0 0.0
    %872 = vmatpush.msra.mxu0 0.0
    %873 = vmatpush.msra.mxu0 0.0
    %874 = vmatpush.msra.mxu0 0.0
    %875 = vmatpush.msra.mxu0 0.0
    %876 = vmatpush.msra.mxu0 0.0
    %v877 = vand.u32 %v822, 4294901760
    %v878 = vsub.f32 %v822, %v877
    %v879 = vand.u32 %v878, 4294901760
    %v880 = vsub.f32 %v878, %v879
    %v881 = vand.u32 %v880, 4294901760
    %882 = vmatpush.msra.mxu0 %v881
    %v883 = vand.u32 %v821, 4294901760
    %v884 = vsub.f32 %v821, %v883
    %v885 = vand.u32 %v884, 4294901760
    %v886 = vsub.f32 %v884, %v885
    %v887 = vand.u32 %v886, 4294901760
    %888 = vmatpush.msra.mxu0 %v887
    %v889 = vand.u32 %v31, 4294901760
    %890 = vmatmul.f32.gmra.mxu0 %v889
    %v891 = vpop.f32.mrf.mxu0
    %v892 = vadd.f32 %v853, %v891
    %v893 = vand.u32 %v34, 4294901760
    %894 = vmatmul.f32.gmra.mxu0 %v893
    %v895 = vpop.f32.mrf.mxu0
    %v896 = vadd.f32 %v861, %v895
    %897 = vdwg.mxu0
    %898 = vmatpush.msra.mxu0 0.0
    %899 = vmatpush.msra.mxu0 0.0
    %900 = vmatpush.msra.mxu0 0.0
    %901 = vmatpush.msra.mxu0 0.0
    %902 = vmatpush.msra.mxu0 0.0
    %903 = vmatpush.msra.mxu0 0.0
    %904 = vmatpush.msra.mxu0 0.0
    %905 = vmatpush.msra.mxu0 0.0
    %906 = vmatpush.msra.mxu0 0.0
    %907 = vmatpush.msra.mxu0 0.0
    %908 = vmatpush.msra.mxu0 0.0
    %909 = vmatpush.msra.mxu0 0.0
    %910 = vmatpush.msra.mxu0 0.0
    %911 = vmatpush.msra.mxu0 0.0
    %v912 = vand.u32 %v822, 4294901760
    %v913 = vsub.f32 %v822, %v912
    %914 = vmatpush.msra.mxu0 %v913
    %v915 = vand.u32 %v821, 4294901760
    %v916 = vsub.f32 %v821, %v915
    %917 = vmatpush.msra.mxu0 %v916
    %v918 = vand.u32 %v31, 4294901760
    %v919 = vsub.f32 %v31, %v918
    %920 = vmatmul.f32.gmra.mxu0 %v919
    %v921 = vpop.f32.mrf.mxu0
    %v922 = vadd.f32 %v892, %v921
    %v923 = vand.u32 %v34, 4294901760
    %v924 = vsub.f32 %v34, %v923
    %925 = vmatmul.f32.gmra.mxu0 %v924
    %v926 = vpop.f32.mrf.mxu0
    %v927 = vadd.f32 %v896, %v926
    %928 = vdwg.mxu0
    %929 = vmatpush.msra.mxu0 0.0
    %930 = vmatpush.msra.mxu0 0.0
    %931 = vmatpush.msra.mxu0 0.0
    %932 = vmatpush.msra.mxu0 0.0
    %933 = vmatpush.msra.mxu0 0.0
    %934 = vmatpush.msra.mxu0 0.0
    %935 = vmatpush.msra.mxu0 0.0
    %936 = vmatpush.msra.mxu0 0.0
    %937 = vmatpush.msra.mxu0 0.0
    %938 = vmatpush.msra.mxu0 0.0
    %939 = vmatpush.msra.mxu0 0.0
    %940 = vmatpush.msra.mxu0 0.0
    %941 = vmatpush.msra.mxu0 0.0
    %942 = vmatpush.msra.mxu0 0.0
    %v943 = vand.u32 %v822, 4294901760
    %944 = vmatpush.msra.mxu0 %v943
    %v945 = vand.u32 %v821, 4294901760
    %946 = vmatpush.msra.mxu0 %v945
    %v947 = vand.u32 %v31, 4294901760
    %v948 = vsub.f32 %v31, %v947
    %v949 = vand.u32 %v948, 4294901760
    %950 = vmatmul.f32.gmra.mxu0 %v949
    %v951 = vpop.f32.mrf.mxu0
    %v952 = vadd.f32 %v922, %v951
    %v953 = vand.u32 %v34, 4294901760
    %v954 = vsub.f32 %v34, %v953
    %v955 = vand.u32 %v954, 4294901760
    %956 = vmatmul.f32.gmra.mxu0 %v955
    %v957 = vpop.f32.mrf.mxu0
    %v958 = vadd.f32 %v927, %v957
    %959 = vdwg.mxu0
    %960 = vmatpush.msra.mxu0 0.0
    %961 = vmatpush.msra.mxu0 0.0
    %962 = vmatpush.msra.mxu0 0.0
    %963 = vmatpush.msra.mxu0 0.0
    %964 = vmatpush.msra.mxu0 0.0
    %965 = vmatpush.msra.mxu0 0.0
    %966 = vmatpush.msra.mxu0 0.0
    %967 = vmatpush.msra.mxu0 0.0
    %968 = vmatpush.msra.mxu0 0.0
    %969 = vmatpush.msra.mxu0 0.0
    %970 = vmatpush.msra.mxu0 0.0
    %971 = vmatpush.msra.mxu0 0.0
    %972 = vmatpush.msra.mxu0 0.0
    %973 = vmatpush.msra.mxu0 0.0
    %v974 = vand.u32 %v822, 4294901760
    %v975 = vsub.f32 %v822, %v974
    %v976 = vand.u32 %v975, 4294901760
    %977 = vmatpush.msra.mxu0 %v976
    %v978 = vand.u32 %v821, 4294901760
    %v979 = vsub.f32 %v821, %v978
    %v980 = vand.u32 %v979, 4294901760
    %981 = vmatpush.msra.mxu0 %v980
    %v982 = vand.u32 %v31, 4294901760
    %983 = vmatmul.f32.gmra.mxu0 %v982
    %v984 = vpop.f32.mrf.mxu0
    %v985 = vadd.f32 %v952, %v984
    %v986 = vand.u32 %v34, 4294901760
    %987 = vmatmul.f32.gmra.mxu0 %v986
    %v988 = vpop.f32.mrf.mxu0
    %v989 = vadd.f32 %v958, %v988
    %990 = vdwg.mxu0
    %991 = vmatpush.msra.mxu0 0.0
    %992 = vmatpush.msra.mxu0 0.0
    %993 = vmatpush.msra.mxu0 0.0
    %994 = vmatpush.msra.mxu0 0.0
    %995 = vmatpush.msra.mxu0 0.0
    %996 = vmatpush.msra.mxu0 0.0
    %997 = vmatpush.msra.mxu0 0.0
    %998 = vmatpush.msra.mxu0 0.0
    %999 = vmatpush.msra.mxu0 0.0
    %1000 = vmatpush.msra.mxu0 0.0
    %1001 = vmatpush.msra.mxu0 0.0
    %1002 = vmatpush.msra.mxu0 0.0
    %1003 = vmatpush.msra.mxu0 0.0
    %1004 = vmatpush.msra.mxu0 0.0
    %v1005 = vand.u32 %v822, 4294901760
    %1006 = vmatpush.msra.mxu0 %v1005
    %v1007 = vand.u32 %v821, 4294901760
    %1008 = vmatpush.msra.mxu0 %v1007
    %v1009 = vand.u32 %v31, 4294901760
    %1010 = vmatmul.f32.gmra.mxu0 %v1009
    %v1011 = vpop.f32.mrf.mxu0
    %v1012 = vadd.f32 %v985, %v1011
    %v1013 = vand.u32 %v34, 4294901760
    %1014 = vmatmul.f32.gmra.mxu0 %v1013
    %v1015 = vpop.f32.mrf.mxu0
    %v1016 = vadd.f32 %v989, %v1015
    %1017 = vdwg.mxu0
    %s1018 = scalar_lea.vmem %s1, 80
    %v1019 = vld [vmem:[%s1018] sm:$0xff]
    %v1020 = vld [vmem:[%s1018 + $0x8] sm:$0xff]
    %s1021 = scalar_lea.vmem %s2, 5
    %v1022 = vld [vmem:[%s1021] sm:$0x1]
    %v1024 = vperm.slane %v1022, 0
    %1026 = vmatpush.msra.mxu0 0.0
    %1027 = vmatpush.msra.mxu0 0.0
    %1028 = vmatpush.msra.mxu0 0.0
    %1029 = vmatpush.msra.mxu0 0.0
    %1030 = vmatpush.msra.mxu0 0.0
    %1031 = vmatpush.msra.mxu0 0.0
    %1032 = vmatpush.msra.mxu0 0.0
    %1033 = vmatpush.msra.mxu0 0.0
    %1034 = vmatpush.msra.mxu0 0.0
    %1035 = vmatpush.msra.mxu0 0.0
    %1036 = vmatpush.msra.mxu0 0.0
    %1037 = vmatpush.msra.mxu0 0.0
    %1038 = vmatpush.msra.mxu0 0.0
    %1039 = vmatpush.msra.mxu0 0.0
    %v1040 = vand.u32 %v1020, 4294901760
    %1041 = vmatpush.msra.mxu0 %v1040
    %v1042 = vand.u32 %v1019, 4294901760
    %1043 = vmatpush.msra.mxu0 %v1042
    %v1044 = vand.u32 %v31, 4294901760
    %v1045 = vsub.f32 %v31, %v1044
    %v1046 = vand.u32 %v1045, 4294901760
    %v1047 = vsub.f32 %v1045, %v1046
    %v1048 = vand.u32 %v1047, 4294901760
    %1049 = vmatmul.f32.gmra.mxu0 %v1048
    %v1050 = vpop.f32.mrf.mxu0
    %v1051 = vadd.f32 %v1024, %v1050
    %v1052 = vand.u32 %v34, 4294901760
    %v1053 = vsub.f32 %v34, %v1052
    %v1054 = vand.u32 %v1053, 4294901760
    %v1055 = vsub.f32 %v1053, %v1054
    %v1056 = vand.u32 %v1055, 4294901760
    %1057 = vmatmul.f32.gmra.mxu0 %v1056
    %v1058 = vpop.f32.mrf.mxu0
    %v1059 = vadd.f32 %v1024, %v1058
    %1060 = vdwg.mxu0
    %1061 = vmatpush.msra.mxu0 0.0
    %1062 = vmatpush.msra.mxu0 0.0
    %1063 = vmatpush.msra.mxu0 0.0
    %1064 = vmatpush.msra.mxu0 0.0
    %1065 = vmatpush.msra.mxu0 0.0
    %1066 = vmatpush.msra.mxu0 0.0
    %1067 = vmatpush.msra.mxu0 0.0
    %1068 = vmatpush.msra.mxu0 0.0
    %1069 = vmatpush.msra.mxu0 0.0
    %1070 = vmatpush.msra.mxu0 0.0
    %1071 = vmatpush.msra.mxu0 0.0
    %1072 = vmatpush.msra.mxu0 0.0
    %1073 = vmatpush.msra.mxu0 0.0
    %1074 = vmatpush.msra.mxu0 0.0
    %v1075 = vand.u32 %v1020, 4294901760
    %v1076 = vsub.f32 %v1020, %v1075
    %v1077 = vand.u32 %v1076, 4294901760
    %v1078 = vsub.f32 %v1076, %v1077
    %v1079 = vand.u32 %v1078, 4294901760
    %1080 = vmatpush.msra.mxu0 %v1079
    %v1081 = vand.u32 %v1019, 4294901760
    %v1082 = vsub.f32 %v1019, %v1081
    %v1083 = vand.u32 %v1082, 4294901760
    %v1084 = vsub.f32 %v1082, %v1083
    %v1085 = vand.u32 %v1084, 4294901760
    %1086 = vmatpush.msra.mxu0 %v1085
    %v1087 = vand.u32 %v31, 4294901760
    %1088 = vmatmul.f32.gmra.mxu0 %v1087
    %v1089 = vpop.f32.mrf.mxu0
    %v1090 = vadd.f32 %v1051, %v1089
    %v1091 = vand.u32 %v34, 4294901760
    %1092 = vmatmul.f32.gmra.mxu0 %v1091
    %v1093 = vpop.f32.mrf.mxu0
    %v1094 = vadd.f32 %v1059, %v1093
    %1095 = vdwg.mxu0
    %1096 = vmatpush.msra.mxu0 0.0
    %1097 = vmatpush.msra.mxu0 0.0
    %1098 = vmatpush.msra.mxu0 0.0
    %1099 = vmatpush.msra.mxu0 0.0
    %1100 = vmatpush.msra.mxu0 0.0
    %1101 = vmatpush.msra.mxu0 0.0
    %1102 = vmatpush.msra.mxu0 0.0
    %1103 = vmatpush.msra.mxu0 0.0
    %1104 = vmatpush.msra.mxu0 0.0
    %1105 = vmatpush.msra.mxu0 0.0
    %1106 = vmatpush.msra.mxu0 0.0
    %1107 = vmatpush.msra.mxu0 0.0
    %1108 = vmatpush.msra.mxu0 0.0
    %1109 = vmatpush.msra.mxu0 0.0
    %v1110 = vand.u32 %v1020, 4294901760
    %v1111 = vsub.f32 %v1020, %v1110
    %1112 = vmatpush.msra.mxu0 %v1111
    %v1113 = vand.u32 %v1019, 4294901760
    %v1114 = vsub.f32 %v1019, %v1113
    %1115 = vmatpush.msra.mxu0 %v1114
    %v1116 = vand.u32 %v31, 4294901760
    %v1117 = vsub.f32 %v31, %v1116
    %1118 = vmatmul.f32.gmra.mxu0 %v1117
    %v1119 = vpop.f32.mrf.mxu0
    %v1120 = vadd.f32 %v1090, %v1119
    %v1121 = vand.u32 %v34, 4294901760
    %v1122 = vsub.f32 %v34, %v1121
    %1123 = vmatmul.f32.gmra.mxu0 %v1122
    %v1124 = vpop.f32.mrf.mxu0
    %v1125 = vadd.f32 %v1094, %v1124
    %1126 = vdwg.mxu0
    %1127 = vmatpush.msra.mxu0 0.0
    %1128 = vmatpush.msra.mxu0 0.0
    %1129 = vmatpush.msra.mxu0 0.0
    %1130 = vmatpush.msra.mxu0 0.0
    %1131 = vmatpush.msra.mxu0 0.0
    %1132 = vmatpush.msra.mxu0 0.0
    %1133 = vmatpush.msra.mxu0 0.0
    %1134 = vmatpush.msra.mxu0 0.0
    %1135 = vmatpush.msra.mxu0 0.0
    %1136 = vmatpush.msra.mxu0 0.0
    %1137 = vmatpush.msra.mxu0 0.0
    %1138 = vmatpush.msra.mxu0 0.0
    %1139 = vmatpush.msra.mxu0 0.0
    %1140 = vmatpush.msra.mxu0 0.0
    %v1141 = vand.u32 %v1020, 4294901760
    %1142 = vmatpush.msra.mxu0 %v1141
    %v1143 = vand.u32 %v1019, 4294901760
    %1144 = vmatpush.msra.mxu0 %v1143
    %v1145 = vand.u32 %v31, 4294901760
    %v1146 = vsub.f32 %v31, %v1145
    %v1147 = vand.u32 %v1146, 4294901760
    %1148 = vmatmul.f32.gmra.mxu0 %v1147
    %v1149 = vpop.f32.mrf.mxu0
    %v1150 = vadd.f32 %v1120, %v1149
    %v1151 = vand.u32 %v34, 4294901760
    %v1152 = vsub.f32 %v34, %v1151
    %v1153 = vand.u32 %v1152, 4294901760
    %1154 = vmatmul.f32.gmra.mxu0 %v1153
    %v1155 = vpop.f32.mrf.mxu0
    %v1156 = vadd.f32 %v1125, %v1155
    %1157 = vdwg.mxu0
    %1158 = vmatpush.msra.mxu0 0.0
    %1159 = vmatpush.msra.mxu0 0.0
    %1160 = vmatpush.msra.mxu0 0.0
    %1161 = vmatpush.msra.mxu0 0.0
    %1162 = vmatpush.msra.mxu0 0.0
    %1163 = vmatpush.msra.mxu0 0.0
    %1164 = vmatpush.msra.mxu0 0.0
    %1165 = vmatpush.msra.mxu0 0.0
    %1166 = vmatpush.msra.mxu0 0.0
    %1167 = vmatpush.msra.mxu0 0.0
    %1168 = vmatpush.msra.mxu0 0.0
    %1169 = vmatpush.msra.mxu0 0.0
    %1170 = vmatpush.msra.mxu0 0.0
    %1171 = vmatpush.msra.mxu0 0.0
    %v1172 = vand.u32 %v1020, 4294901760
    %v1173 = vsub.f32 %v1020, %v1172
    %v1174 = vand.u32 %v1173, 4294901760
    %1175 = vmatpush.msra.mxu0 %v1174
    %v1176 = vand.u32 %v1019, 4294901760
    %v1177 = vsub.f32 %v1019, %v1176
    %v1178 = vand.u32 %v1177, 4294901760
    %1179 = vmatpush.msra.mxu0 %v1178
    %v1180 = vand.u32 %v31, 4294901760
    %1181 = vmatmul.f32.gmra.mxu0 %v1180
    %v1182 = vpop.f32.mrf.mxu0
    %v1183 = vadd.f32 %v1150, %v1182
    %v1184 = vand.u32 %v34, 4294901760
    %1185 = vmatmul.f32.gmra.mxu0 %v1184
    %v1186 = vpop.f32.mrf.mxu0
    %v1187 = vadd.f32 %v1156, %v1186
    %1188 = vdwg.mxu0
    %1189 = vmatpush.msra.mxu0 0.0
    %1190 = vmatpush.msra.mxu0 0.0
    %1191 = vmatpush.msra.mxu0 0.0
    %1192 = vmatpush.msra.mxu0 0.0
    %1193 = vmatpush.msra.mxu0 0.0
    %1194 = vmatpush.msra.mxu0 0.0
    %1195 = vmatpush.msra.mxu0 0.0
    %1196 = vmatpush.msra.mxu0 0.0
    %1197 = vmatpush.msra.mxu0 0.0
    %1198 = vmatpush.msra.mxu0 0.0
    %1199 = vmatpush.msra.mxu0 0.0
    %1200 = vmatpush.msra.mxu0 0.0
    %1201 = vmatpush.msra.mxu0 0.0
    %1202 = vmatpush.msra.mxu0 0.0
    %v1203 = vand.u32 %v1020, 4294901760
    %1204 = vmatpush.msra.mxu0 %v1203
    %v1205 = vand.u32 %v1019, 4294901760
    %1206 = vmatpush.msra.mxu0 %v1205
    %v1207 = vand.u32 %v31, 4294901760
    %1208 = vmatmul.f32.gmra.mxu0 %v1207
    %v1209 = vpop.f32.mrf.mxu0
    %v1210 = vadd.f32 %v1183, %v1209
    %v1211 = vand.u32 %v34, 4294901760
    %1212 = vmatmul.f32.gmra.mxu0 %v1211
    %v1213 = vpop.f32.mrf.mxu0
    %v1214 = vadd.f32 %v1187, %v1213
    %1215 = vdwg.mxu0
    %v1218 = vrot.slane %v220, 1
    %v1219 = vrot.slane %v220, 2
    %v1220 = vrot.slane %v220, 3
    %v1221 = vrot.slane %v220, 4
    %v1222 = vrot.slane %v220, 5
    %v1223 = vrot.slane %v220, 6
    %v1224 = vrot.slane %v220, 7
    %v1225 = vrot.slane %v224, 1
    %v1226 = vrot.slane %v224, 2
    %v1227 = vrot.slane %v224, 3
    %v1228 = vrot.slane %v224, 4
    %v1229 = vrot.slane %v224, 5
    %v1230 = vrot.slane %v224, 6
    %v1231 = vrot.slane %v224, 7
    %v1232 = vperm.slane %v220, 0
    %v1233 = vperm.slane %v1218, 0
    %v1234 = vperm.slane %v1219, 0
    %v1235 = vperm.slane %v1220, 0
    %v1236 = vperm.slane %v1221, 0
    %v1237 = vperm.slane %v1222, 0
    %v1238 = vperm.slane %v1223, 0
    %v1239 = vperm.slane %v1224, 0
    %v1240 = vperm.slane %v224, 0
    %v1241 = vperm.slane %v1225, 0
    %v1242 = vperm.slane %v1226, 0
    %v1243 = vperm.slane %v1227, 0
    %v1244 = vperm.slane %v1228, 0
    %v1245 = vperm.slane %v1229, 0
    %v1246 = vperm.slane %v1230, 0
    %v1247 = vperm.slane %v1231, 0
    %v1264 = vmul.f32 %v1232, %v616
    %v1265 = vmul.f32 %v1233, %v616
    %v1266 = vmul.f32 %v1234, %v616
    %v1267 = vmul.f32 %v1235, %v616
    %v1268 = vmul.f32 %v1236, %v616
    %v1269 = vmul.f32 %v1237, %v616
    %v1270 = vmul.f32 %v1238, %v616
    %v1271 = vmul.f32 %v1239, %v616
    %v1272 = vmul.f32 %v1240, %v620
    %v1273 = vmul.f32 %v1241, %v620
    %v1274 = vmul.f32 %v1242, %v620
    %v1275 = vmul.f32 %v1243, %v620
    %v1276 = vmul.f32 %v1244, %v620
    %v1277 = vmul.f32 %v1245, %v620
    %v1278 = vmul.f32 %v1246, %v620
    %v1279 = vmul.f32 %v1247, %v620
    %v1282 = vrot.slane %v418, 1
    %v1283 = vrot.slane %v418, 2
    %v1284 = vrot.slane %v418, 3
    %v1285 = vrot.slane %v418, 4
    %v1286 = vrot.slane %v418, 5
    %v1287 = vrot.slane %v418, 6
    %v1288 = vrot.slane %v418, 7
    %v1289 = vrot.slane %v422, 1
    %v1290 = vrot.slane %v422, 2
    %v1291 = vrot.slane %v422, 3
    %v1292 = vrot.slane %v422, 4
    %v1293 = vrot.slane %v422, 5
    %v1294 = vrot.slane %v422, 6
    %v1295 = vrot.slane %v422, 7
    %v1296 = vperm.slane %v418, 0
    %v1297 = vperm.slane %v1282, 0
    %v1298 = vperm.slane %v1283, 0
    %v1299 = vperm.slane %v1284, 0
    %v1300 = vperm.slane %v1285, 0
    %v1301 = vperm.slane %v1286, 0
    %v1302 = vperm.slane %v1287, 0
    %v1303 = vperm.slane %v1288, 0
    %v1304 = vperm.slane %v422, 0
    %v1305 = vperm.slane %v1289, 0
    %v1306 = vperm.slane %v1290, 0
    %v1307 = vperm.slane %v1291, 0
    %v1308 = vperm.slane %v1292, 0
    %v1309 = vperm.slane %v1293, 0
    %v1310 = vperm.slane %v1294, 0
    %v1311 = vperm.slane %v1295, 0
    %v1328 = vmul.f32 %v1296, %v814
    %v1329 = vmul.f32 %v1297, %v814
    %v1330 = vmul.f32 %v1298, %v814
    %v1331 = vmul.f32 %v1299, %v814
    %v1332 = vmul.f32 %v1300, %v814
    %v1333 = vmul.f32 %v1301, %v814
    %v1334 = vmul.f32 %v1302, %v814
    %v1335 = vmul.f32 %v1303, %v814
    %v1336 = vmul.f32 %v1304, %v818
    %v1337 = vmul.f32 %v1305, %v818
    %v1338 = vmul.f32 %v1306, %v818
    %v1339 = vmul.f32 %v1307, %v818
    %v1340 = vmul.f32 %v1308, %v818
    %v1341 = vmul.f32 %v1309, %v818
    %v1342 = vmul.f32 %v1310, %v818
    %v1343 = vmul.f32 %v1311, %v818
    %v1344 = vadd.f32 %v1264, %v1328
    %v1345 = vadd.f32 %v1265, %v1329
    %v1346 = vadd.f32 %v1266, %v1330
    %v1347 = vadd.f32 %v1267, %v1331
    %v1348 = vadd.f32 %v1268, %v1332
    %v1349 = vadd.f32 %v1269, %v1333
    %v1350 = vadd.f32 %v1270, %v1334
    %v1351 = vadd.f32 %v1271, %v1335
    %v1352 = vadd.f32 %v1272, %v1336
    %v1353 = vadd.f32 %v1273, %v1337
    %v1354 = vadd.f32 %v1274, %v1338
    %v1355 = vadd.f32 %v1275, %v1339
    %v1356 = vadd.f32 %v1276, %v1340
    %v1357 = vadd.f32 %v1277, %v1341
    %v1358 = vadd.f32 %v1278, %v1342
    %v1359 = vadd.f32 %v1279, %v1343
    %vm1360 = vcmask 64512
    %v1361 = vsel %vm1360, %v1344, -inf
    %v1362 = vrot.slane %v1361, 4
    %v1363 = vmax.f32 %v1361, %v1362
    %v1364 = vrot.slane %v1363, 2
    %v1365 = vmax.f32 %v1363, %v1364
    %v1366 = vrot.slane %v1365, 1
    %v1367 = vmax.f32 %v1365, %v1366
    %v1368 = vsel %vm1360, %v1345, -inf
    %v1369 = vrot.slane %v1368, 4
    %v1370 = vmax.f32 %v1368, %v1369
    %v1371 = vrot.slane %v1370, 2
    %v1372 = vmax.f32 %v1370, %v1371
    %v1373 = vrot.slane %v1372, 1
    %v1374 = vmax.f32 %v1372, %v1373
    %v1375 = vsel %vm1360, %v1346, -inf
    %v1376 = vrot.slane %v1375, 4
    %v1377 = vmax.f32 %v1375, %v1376
    %v1378 = vrot.slane %v1377, 2
    %v1379 = vmax.f32 %v1377, %v1378
    %v1380 = vrot.slane %v1379, 1
    %v1381 = vmax.f32 %v1379, %v1380
    %v1382 = vsel %vm1360, %v1347, -inf
    %v1383 = vrot.slane %v1382, 4
    %v1384 = vmax.f32 %v1382, %v1383
    %v1385 = vrot.slane %v1384, 2
    %v1386 = vmax.f32 %v1384, %v1385
    %v1387 = vrot.slane %v1386, 1
    %v1388 = vmax.f32 %v1386, %v1387
    %v1389 = vsel %vm1360, %v1348, -inf
    %v1390 = vrot.slane %v1389, 4
    %v1391 = vmax.f32 %v1389, %v1390
    %v1392 = vrot.slane %v1391, 2
    %v1393 = vmax.f32 %v1391, %v1392
    %v1394 = vrot.slane %v1393, 1
    %v1395 = vmax.f32 %v1393, %v1394
    %v1396 = vsel %vm1360, %v1349, -inf
    %v1397 = vrot.slane %v1396, 4
    %v1398 = vmax.f32 %v1396, %v1397
    %v1399 = vrot.slane %v1398, 2
    %v1400 = vmax.f32 %v1398, %v1399
    %v1401 = vrot.slane %v1400, 1
    %v1402 = vmax.f32 %v1400, %v1401
    %v1403 = vsel %vm1360, %v1350, -inf
    %v1404 = vrot.slane %v1403, 4
    %v1405 = vmax.f32 %v1403, %v1404
    %v1406 = vrot.slane %v1405, 2
    %v1407 = vmax.f32 %v1405, %v1406
    %v1408 = vrot.slane %v1407, 1
    %v1409 = vmax.f32 %v1407, %v1408
    %v1410 = vsel %vm1360, %v1351, -inf
    %v1411 = vrot.slane %v1410, 4
    %v1412 = vmax.f32 %v1410, %v1411
    %v1413 = vrot.slane %v1412, 2
    %v1414 = vmax.f32 %v1412, %v1413
    %v1415 = vrot.slane %v1414, 1
    %v1416 = vmax.f32 %v1414, %v1415
    %v1417 = vsel %vm1360, %v1352, -inf
    %v1418 = vrot.slane %v1417, 4
    %v1419 = vmax.f32 %v1417, %v1418
    %v1420 = vrot.slane %v1419, 2
    %v1421 = vmax.f32 %v1419, %v1420
    %v1422 = vrot.slane %v1421, 1
    %v1423 = vmax.f32 %v1421, %v1422
    %v1424 = vsel %vm1360, %v1353, -inf
    %v1425 = vrot.slane %v1424, 4
    %v1426 = vmax.f32 %v1424, %v1425
    %v1427 = vrot.slane %v1426, 2
    %v1428 = vmax.f32 %v1426, %v1427
    %v1429 = vrot.slane %v1428, 1
    %v1430 = vmax.f32 %v1428, %v1429
    %v1431 = vsel %vm1360, %v1354, -inf
    %v1432 = vrot.slane %v1431, 4
    %v1433 = vmax.f32 %v1431, %v1432
    %v1434 = vrot.slane %v1433, 2
    %v1435 = vmax.f32 %v1433, %v1434
    %v1436 = vrot.slane %v1435, 1
    %v1437 = vmax.f32 %v1435, %v1436
    %v1438 = vsel %vm1360, %v1355, -inf
    %v1439 = vrot.slane %v1438, 4
    %v1440 = vmax.f32 %v1438, %v1439
    %v1441 = vrot.slane %v1440, 2
    %v1442 = vmax.f32 %v1440, %v1441
    %v1443 = vrot.slane %v1442, 1
    %v1444 = vmax.f32 %v1442, %v1443
    %v1445 = vsel %vm1360, %v1356, -inf
    %v1446 = vrot.slane %v1445, 4
    %v1447 = vmax.f32 %v1445, %v1446
    %v1448 = vrot.slane %v1447, 2
    %v1449 = vmax.f32 %v1447, %v1448
    %v1450 = vrot.slane %v1449, 1
    %v1451 = vmax.f32 %v1449, %v1450
    %v1452 = vsel %vm1360, %v1357, -inf
    %v1453 = vrot.slane %v1452, 4
    %v1454 = vmax.f32 %v1452, %v1453
    %v1455 = vrot.slane %v1454, 2
    %v1456 = vmax.f32 %v1454, %v1455
    %v1457 = vrot.slane %v1456, 1
    %v1458 = vmax.f32 %v1456, %v1457
    %v1459 = vsel %vm1360, %v1358, -inf
    %v1460 = vrot.slane %v1459, 4
    %v1461 = vmax.f32 %v1459, %v1460
    %v1462 = vrot.slane %v1461, 2
    %v1463 = vmax.f32 %v1461, %v1462
    %v1464 = vrot.slane %v1463, 1
    %v1465 = vmax.f32 %v1463, %v1464
    %v1466 = vsel %vm1360, %v1359, -inf
    %v1467 = vrot.slane %v1466, 4
    %v1468 = vmax.f32 %v1466, %v1467
    %v1469 = vrot.slane %v1468, 2
    %v1470 = vmax.f32 %v1468, %v1469
    %v1471 = vrot.slane %v1470, 1
    %v1472 = vmax.f32 %v1470, %v1471
    %v1473 = vsub.f32 %v1344, %v1367
    %v1474 = vsub.f32 %v1345, %v1374
    %v1475 = vsub.f32 %v1346, %v1381
    %v1476 = vsub.f32 %v1347, %v1388
    %v1477 = vsub.f32 %v1348, %v1395
    %v1478 = vsub.f32 %v1349, %v1402
    %v1479 = vsub.f32 %v1350, %v1409
    %v1480 = vsub.f32 %v1351, %v1416
    %v1481 = vsub.f32 %v1352, %v1423
    %v1482 = vsub.f32 %v1353, %v1430
    %v1483 = vsub.f32 %v1354, %v1437
    %v1484 = vsub.f32 %v1355, %v1444
    %v1485 = vsub.f32 %v1356, %v1451
    %v1486 = vsub.f32 %v1357, %v1458
    %v1487 = vsub.f32 %v1358, %v1465
    %v1488 = vsub.f32 %v1359, %v1472
    %v1489 = vmul.f32 %v1473, 1.442695
    %v1490 = vpow.pop %v1489
    %v1491 = vmul.f32 %v1474, 1.442695
    %v1492 = vpow.pop %v1491
    %v1493 = vmul.f32 %v1475, 1.442695
    %v1494 = vpow.pop %v1493
    %v1495 = vmul.f32 %v1476, 1.442695
    %v1496 = vpow.pop %v1495
    %v1497 = vmul.f32 %v1477, 1.442695
    %v1498 = vpow.pop %v1497
    %v1499 = vmul.f32 %v1478, 1.442695
    %v1500 = vpow.pop %v1499
    %v1501 = vmul.f32 %v1479, 1.442695
    %v1502 = vpow.pop %v1501
    %v1503 = vmul.f32 %v1480, 1.442695
    %v1504 = vpow.pop %v1503
    %v1505 = vmul.f32 %v1481, 1.442695
    %v1506 = vpow.pop %v1505
    %v1507 = vmul.f32 %v1482, 1.442695
    %v1508 = vpow.pop %v1507
    %v1509 = vmul.f32 %v1483, 1.442695
    %v1510 = vpow.pop %v1509
    %v1511 = vmul.f32 %v1484, 1.442695
    %v1512 = vpow.pop %v1511
    %v1513 = vmul.f32 %v1485, 1.442695
    %v1514 = vpow.pop %v1513
    %v1515 = vmul.f32 %v1486, 1.442695
    %v1516 = vpow.pop %v1515
    %v1517 = vmul.f32 %v1487, 1.442695
    %v1518 = vpow.pop %v1517
    %v1519 = vmul.f32 %v1488, 1.442695
    %v1520 = vpow.pop %v1519
    %v1521 = vsel %vm1360, %v1490, 0.0
    %v1522 = vrot.slane %v1521, 4
    %v1523 = vadd.f32 %v1521, %v1522
    %v1524 = vrot.slane %v1523, 2
    %v1525 = vadd.f32 %v1523, %v1524
    %v1526 = vrot.slane %v1525, 1
    %v1527 = vadd.f32 %v1525, %v1526
    %v1528 = vsel %vm1360, %v1492, 0.0
    %v1529 = vrot.slane %v1528, 4
    %v1530 = vadd.f32 %v1528, %v1529
    %v1531 = vrot.slane %v1530, 2
    %v1532 = vadd.f32 %v1530, %v1531
    %v1533 = vrot.slane %v1532, 1
    %v1534 = vadd.f32 %v1532, %v1533
    %v1535 = vsel %vm1360, %v1494, 0.0
    %v1536 = vrot.slane %v1535, 4
    %v1537 = vadd.f32 %v1535, %v1536
    %v1538 = vrot.slane %v1537, 2
    %v1539 = vadd.f32 %v1537, %v1538
    %v1540 = vrot.slane %v1539, 1
    %v1541 = vadd.f32 %v1539, %v1540
    %v1542 = vsel %vm1360, %v1496, 0.0
    %v1543 = vrot.slane %v1542, 4
    %v1544 = vadd.f32 %v1542, %v1543
    %v1545 = vrot.slane %v1544, 2
    %v1546 = vadd.f32 %v1544, %v1545
    %v1547 = vrot.slane %v1546, 1
    %v1548 = vadd.f32 %v1546, %v1547
    %v1549 = vsel %vm1360, %v1498, 0.0
    %v1550 = vrot.slane %v1549, 4
    %v1551 = vadd.f32 %v1549, %v1550
    %v1552 = vrot.slane %v1551, 2
    %v1553 = vadd.f32 %v1551, %v1552
    %v1554 = vrot.slane %v1553, 1
    %v1555 = vadd.f32 %v1553, %v1554
    %v1556 = vsel %vm1360, %v1500, 0.0
    %v1557 = vrot.slane %v1556, 4
    %v1558 = vadd.f32 %v1556, %v1557
    %v1559 = vrot.slane %v1558, 2
    %v1560 = vadd.f32 %v1558, %v1559
    %v1561 = vrot.slane %v1560, 1
    %v1562 = vadd.f32 %v1560, %v1561
    %v1563 = vsel %vm1360, %v1502, 0.0
    %v1564 = vrot.slane %v1563, 4
    %v1565 = vadd.f32 %v1563, %v1564
    %v1566 = vrot.slane %v1565, 2
    %v1567 = vadd.f32 %v1565, %v1566
    %v1568 = vrot.slane %v1567, 1
    %v1569 = vadd.f32 %v1567, %v1568
    %v1570 = vsel %vm1360, %v1504, 0.0
    %v1571 = vrot.slane %v1570, 4
    %v1572 = vadd.f32 %v1570, %v1571
    %v1573 = vrot.slane %v1572, 2
    %v1574 = vadd.f32 %v1572, %v1573
    %v1575 = vrot.slane %v1574, 1
    %v1576 = vadd.f32 %v1574, %v1575
    %v1577 = vsel %vm1360, %v1506, 0.0
    %v1578 = vrot.slane %v1577, 4
    %v1579 = vadd.f32 %v1577, %v1578
    %v1580 = vrot.slane %v1579, 2
    %v1581 = vadd.f32 %v1579, %v1580
    %v1582 = vrot.slane %v1581, 1
    %v1583 = vadd.f32 %v1581, %v1582
    %v1584 = vsel %vm1360, %v1508, 0.0
    %v1585 = vrot.slane %v1584, 4
    %v1586 = vadd.f32 %v1584, %v1585
    %v1587 = vrot.slane %v1586, 2
    %v1588 = vadd.f32 %v1586, %v1587
    %v1589 = vrot.slane %v1588, 1
    %v1590 = vadd.f32 %v1588, %v1589
    %v1591 = vsel %vm1360, %v1510, 0.0
    %v1592 = vrot.slane %v1591, 4
    %v1593 = vadd.f32 %v1591, %v1592
    %v1594 = vrot.slane %v1593, 2
    %v1595 = vadd.f32 %v1593, %v1594
    %v1596 = vrot.slane %v1595, 1
    %v1597 = vadd.f32 %v1595, %v1596
    %v1598 = vsel %vm1360, %v1512, 0.0
    %v1599 = vrot.slane %v1598, 4
    %v1600 = vadd.f32 %v1598, %v1599
    %v1601 = vrot.slane %v1600, 2
    %v1602 = vadd.f32 %v1600, %v1601
    %v1603 = vrot.slane %v1602, 1
    %v1604 = vadd.f32 %v1602, %v1603
    %v1605 = vsel %vm1360, %v1514, 0.0
    %v1606 = vrot.slane %v1605, 4
    %v1607 = vadd.f32 %v1605, %v1606
    %v1608 = vrot.slane %v1607, 2
    %v1609 = vadd.f32 %v1607, %v1608
    %v1610 = vrot.slane %v1609, 1
    %v1611 = vadd.f32 %v1609, %v1610
    %v1612 = vsel %vm1360, %v1516, 0.0
    %v1613 = vrot.slane %v1612, 4
    %v1614 = vadd.f32 %v1612, %v1613
    %v1615 = vrot.slane %v1614, 2
    %v1616 = vadd.f32 %v1614, %v1615
    %v1617 = vrot.slane %v1616, 1
    %v1618 = vadd.f32 %v1616, %v1617
    %v1619 = vsel %vm1360, %v1518, 0.0
    %v1620 = vrot.slane %v1619, 4
    %v1621 = vadd.f32 %v1619, %v1620
    %v1622 = vrot.slane %v1621, 2
    %v1623 = vadd.f32 %v1621, %v1622
    %v1624 = vrot.slane %v1623, 1
    %v1625 = vadd.f32 %v1623, %v1624
    %v1626 = vsel %vm1360, %v1520, 0.0
    %v1627 = vrot.slane %v1626, 4
    %v1628 = vadd.f32 %v1626, %v1627
    %v1629 = vrot.slane %v1628, 2
    %v1630 = vadd.f32 %v1628, %v1629
    %v1631 = vrot.slane %v1630, 1
    %v1632 = vadd.f32 %v1630, %v1631
    %v1633 = vrcp.pop %v1527
    %v1634 = vmul.f32 %v1527, %v1633
    %v1635 = vsub.f32 1.0, %v1634
    %v1636 = vmul.f32 %v1633, %v1635
    %v1637 = vadd.f32 %v1633, %v1636
    %vm1638 = vweird.f32 %v1527
    %vm1639 = vweird.f32 %v1633
    %vm1640 = vmor %vm1638, %vm1639
    %v1641 = vsel %vm1640, %v1633, %v1637
    %v1642 = vand.u32 2147483647, %v1527
    %vm1643 = vcmp.eq.f32.partialorder %v1642, 8.507059e+37
    %v1644 = vand.u32 %v1527, 2147483648
    %v1645 = vor.u32 1.1754944e-38, %v1644
    %v1646 = vsel %vm1643, %v1645, %v1641
    %v1647 = vrcp.pop %v1534
    %v1648 = vmul.f32 %v1534, %v1647
    %v1649 = vsub.f32 1.0, %v1648
    %v1650 = vmul.f32 %v1647, %v1649
    %v1651 = vadd.f32 %v1647, %v1650
    %vm1652 = vweird.f32 %v1534
    %vm1653 = vweird.f32 %v1647
    %vm1654 = vmor %vm1652, %vm1653
    %v1655 = vsel %vm1654, %v1647, %v1651
    %v1656 = vand.u32 2147483647, %v1534
    %vm1657 = vcmp.eq.f32.partialorder %v1656, 8.507059e+37
    %v1658 = vand.u32 %v1534, 2147483648
    %v1659 = vor.u32 1.1754944e-38, %v1658
    %v1660 = vsel %vm1657, %v1659, %v1655
    %v1661 = vrcp.pop %v1541
    %v1662 = vmul.f32 %v1541, %v1661
    %v1663 = vsub.f32 1.0, %v1662
    %v1664 = vmul.f32 %v1661, %v1663
    %v1665 = vadd.f32 %v1661, %v1664
    %vm1666 = vweird.f32 %v1541
    %vm1667 = vweird.f32 %v1661
    %vm1668 = vmor %vm1666, %vm1667
    %v1669 = vsel %vm1668, %v1661, %v1665
    %v1670 = vand.u32 2147483647, %v1541
    %vm1671 = vcmp.eq.f32.partialorder %v1670, 8.507059e+37
    %v1672 = vand.u32 %v1541, 2147483648
    %v1673 = vor.u32 1.1754944e-38, %v1672
    %v1674 = vsel %vm1671, %v1673, %v1669
    %v1675 = vrcp.pop %v1548
    %v1676 = vmul.f32 %v1548, %v1675
    %v1677 = vsub.f32 1.0, %v1676
    %v1678 = vmul.f32 %v1675, %v1677
    %v1679 = vadd.f32 %v1675, %v1678
    %vm1680 = vweird.f32 %v1548
    %vm1681 = vweird.f32 %v1675
    %vm1682 = vmor %vm1680, %vm1681
    %v1683 = vsel %vm1682, %v1675, %v1679
    %v1684 = vand.u32 2147483647, %v1548
    %vm1685 = vcmp.eq.f32.partialorder %v1684, 8.507059e+37
    %v1686 = vand.u32 %v1548, 2147483648
    %v1687 = vor.u32 1.1754944e-38, %v1686
    %v1688 = vsel %vm1685, %v1687, %v1683
    %v1689 = vrcp.pop %v1555
    %v1690 = vmul.f32 %v1555, %v1689
    %v1691 = vsub.f32 1.0, %v1690
    %v1692 = vmul.f32 %v1689, %v1691
    %v1693 = vadd.f32 %v1689, %v1692
    %vm1694 = vweird.f32 %v1555
    %vm1695 = vweird.f32 %v1689
    %vm1696 = vmor %vm1694, %vm1695
    %v1697 = vsel %vm1696, %v1689, %v1693
    %v1698 = vand.u32 2147483647, %v1555
    %vm1699 = vcmp.eq.f32.partialorder %v1698, 8.507059e+37
    %v1700 = vand.u32 %v1555, 2147483648
    %v1701 = vor.u32 1.1754944e-38, %v1700
    %v1702 = vsel %vm1699, %v1701, %v1697
    %v1703 = vrcp.pop %v1562
    %v1704 = vmul.f32 %v1562, %v1703
    %v1705 = vsub.f32 1.0, %v1704
    %v1706 = vmul.f32 %v1703, %v1705
    %v1707 = vadd.f32 %v1703, %v1706
    %vm1708 = vweird.f32 %v1562
    %vm1709 = vweird.f32 %v1703
    %vm1710 = vmor %vm1708, %vm1709
    %v1711 = vsel %vm1710, %v1703, %v1707
    %v1712 = vand.u32 2147483647, %v1562
    %vm1713 = vcmp.eq.f32.partialorder %v1712, 8.507059e+37
    %v1714 = vand.u32 %v1562, 2147483648
    %v1715 = vor.u32 1.1754944e-38, %v1714
    %v1716 = vsel %vm1713, %v1715, %v1711
    %v1717 = vrcp.pop %v1569
    %v1718 = vmul.f32 %v1569, %v1717
    %v1719 = vsub.f32 1.0, %v1718
    %v1720 = vmul.f32 %v1717, %v1719
    %v1721 = vadd.f32 %v1717, %v1720
    %vm1722 = vweird.f32 %v1569
    %vm1723 = vweird.f32 %v1717
    %vm1724 = vmor %vm1722, %vm1723
    %v1725 = vsel %vm1724, %v1717, %v1721
    %v1726 = vand.u32 2147483647, %v1569
    %vm1727 = vcmp.eq.f32.partialorder %v1726, 8.507059e+37
    %v1728 = vand.u32 %v1569, 2147483648
    %v1729 = vor.u32 1.1754944e-38, %v1728
    %v1730 = vsel %vm1727, %v1729, %v1725
    %v1731 = vrcp.pop %v1576
    %v1732 = vmul.f32 %v1576, %v1731
    %v1733 = vsub.f32 1.0, %v1732
    %v1734 = vmul.f32 %v1731, %v1733
    %v1735 = vadd.f32 %v1731, %v1734
    %vm1736 = vweird.f32 %v1576
    %vm1737 = vweird.f32 %v1731
    %vm1738 = vmor %vm1736, %vm1737
    %v1739 = vsel %vm1738, %v1731, %v1735
    %v1740 = vand.u32 2147483647, %v1576
    %vm1741 = vcmp.eq.f32.partialorder %v1740, 8.507059e+37
    %v1742 = vand.u32 %v1576, 2147483648
    %v1743 = vor.u32 1.1754944e-38, %v1742
    %v1744 = vsel %vm1741, %v1743, %v1739
    %v1745 = vrcp.pop %v1583
    %v1746 = vmul.f32 %v1583, %v1745
    %v1747 = vsub.f32 1.0, %v1746
    %v1748 = vmul.f32 %v1745, %v1747
    %v1749 = vadd.f32 %v1745, %v1748
    %vm1750 = vweird.f32 %v1583
    %vm1751 = vweird.f32 %v1745
    %vm1752 = vmor %vm1750, %vm1751
    %v1753 = vsel %vm1752, %v1745, %v1749
    %v1754 = vand.u32 2147483647, %v1583
    %vm1755 = vcmp.eq.f32.partialorder %v1754, 8.507059e+37
    %v1756 = vand.u32 %v1583, 2147483648
    %v1757 = vor.u32 1.1754944e-38, %v1756
    %v1758 = vsel %vm1755, %v1757, %v1753
    %v1759 = vrcp.pop %v1590
    %v1760 = vmul.f32 %v1590, %v1759
    %v1761 = vsub.f32 1.0, %v1760
    %v1762 = vmul.f32 %v1759, %v1761
    %v1763 = vadd.f32 %v1759, %v1762
    %vm1764 = vweird.f32 %v1590
    %vm1765 = vweird.f32 %v1759
    %vm1766 = vmor %vm1764, %vm1765
    %v1767 = vsel %vm1766, %v1759, %v1763
    %v1768 = vand.u32 2147483647, %v1590
    %vm1769 = vcmp.eq.f32.partialorder %v1768, 8.507059e+37
    %v1770 = vand.u32 %v1590, 2147483648
    %v1771 = vor.u32 1.1754944e-38, %v1770
    %v1772 = vsel %vm1769, %v1771, %v1767
    %v1773 = vrcp.pop %v1597
    %v1774 = vmul.f32 %v1597, %v1773
    %v1775 = vsub.f32 1.0, %v1774
    %v1776 = vmul.f32 %v1773, %v1775
    %v1777 = vadd.f32 %v1773, %v1776
    %vm1778 = vweird.f32 %v1597
    %vm1779 = vweird.f32 %v1773
    %vm1780 = vmor %vm1778, %vm1779
    %v1781 = vsel %vm1780, %v1773, %v1777
    %v1782 = vand.u32 2147483647, %v1597
    %vm1783 = vcmp.eq.f32.partialorder %v1782, 8.507059e+37
    %v1784 = vand.u32 %v1597, 2147483648
    %v1785 = vor.u32 1.1754944e-38, %v1784
    %v1786 = vsel %vm1783, %v1785, %v1781
    %v1787 = vrcp.pop %v1604
    %v1788 = vmul.f32 %v1604, %v1787
    %v1789 = vsub.f32 1.0, %v1788
    %v1790 = vmul.f32 %v1787, %v1789
    %v1791 = vadd.f32 %v1787, %v1790
    %vm1792 = vweird.f32 %v1604
    %vm1793 = vweird.f32 %v1787
    %vm1794 = vmor %vm1792, %vm1793
    %v1795 = vsel %vm1794, %v1787, %v1791
    %v1796 = vand.u32 2147483647, %v1604
    %vm1797 = vcmp.eq.f32.partialorder %v1796, 8.507059e+37
    %v1798 = vand.u32 %v1604, 2147483648
    %v1799 = vor.u32 1.1754944e-38, %v1798
    %v1800 = vsel %vm1797, %v1799, %v1795
    %v1801 = vrcp.pop %v1611
    %v1802 = vmul.f32 %v1611, %v1801
    %v1803 = vsub.f32 1.0, %v1802
    %v1804 = vmul.f32 %v1801, %v1803
    %v1805 = vadd.f32 %v1801, %v1804
    %vm1806 = vweird.f32 %v1611
    %vm1807 = vweird.f32 %v1801
    %vm1808 = vmor %vm1806, %vm1807
    %v1809 = vsel %vm1808, %v1801, %v1805
    %v1810 = vand.u32 2147483647, %v1611
    %vm1811 = vcmp.eq.f32.partialorder %v1810, 8.507059e+37
    %v1812 = vand.u32 %v1611, 2147483648
    %v1813 = vor.u32 1.1754944e-38, %v1812
    %v1814 = vsel %vm1811, %v1813, %v1809
    %v1815 = vrcp.pop %v1618
    %v1816 = vmul.f32 %v1618, %v1815
    %v1817 = vsub.f32 1.0, %v1816
    %v1818 = vmul.f32 %v1815, %v1817
    %v1819 = vadd.f32 %v1815, %v1818
    %vm1820 = vweird.f32 %v1618
    %vm1821 = vweird.f32 %v1815
    %vm1822 = vmor %vm1820, %vm1821
    %v1823 = vsel %vm1822, %v1815, %v1819
    %v1824 = vand.u32 2147483647, %v1618
    %vm1825 = vcmp.eq.f32.partialorder %v1824, 8.507059e+37
    %v1826 = vand.u32 %v1618, 2147483648
    %v1827 = vor.u32 1.1754944e-38, %v1826
    %v1828 = vsel %vm1825, %v1827, %v1823
    %v1829 = vrcp.pop %v1625
    %v1830 = vmul.f32 %v1625, %v1829
    %v1831 = vsub.f32 1.0, %v1830
    %v1832 = vmul.f32 %v1829, %v1831
    %v1833 = vadd.f32 %v1829, %v1832
    %vm1834 = vweird.f32 %v1625
    %vm1835 = vweird.f32 %v1829
    %vm1836 = vmor %vm1834, %vm1835
    %v1837 = vsel %vm1836, %v1829, %v1833
    %v1838 = vand.u32 2147483647, %v1625
    %vm1839 = vcmp.eq.f32.partialorder %v1838, 8.507059e+37
    %v1840 = vand.u32 %v1625, 2147483648
    %v1841 = vor.u32 1.1754944e-38, %v1840
    %v1842 = vsel %vm1839, %v1841, %v1837
    %v1843 = vrcp.pop %v1632
    %v1844 = vmul.f32 %v1632, %v1843
    %v1845 = vsub.f32 1.0, %v1844
    %v1846 = vmul.f32 %v1843, %v1845
    %v1847 = vadd.f32 %v1843, %v1846
    %vm1848 = vweird.f32 %v1632
    %vm1849 = vweird.f32 %v1843
    %vm1850 = vmor %vm1848, %vm1849
    %v1851 = vsel %vm1850, %v1843, %v1847
    %v1852 = vand.u32 2147483647, %v1632
    %vm1853 = vcmp.eq.f32.partialorder %v1852, 8.507059e+37
    %v1854 = vand.u32 %v1632, 2147483648
    %v1855 = vor.u32 1.1754944e-38, %v1854
    %v1856 = vsel %vm1853, %v1855, %v1851
    %v1857 = vmul.f32 %v1490, %v1646
    %v1858 = vmul.f32 %v1492, %v1660
    %v1859 = vmul.f32 %v1494, %v1674
    %v1860 = vmul.f32 %v1496, %v1688
    %v1861 = vmul.f32 %v1498, %v1702
    %v1862 = vmul.f32 %v1500, %v1716
    %v1863 = vmul.f32 %v1502, %v1730
    %v1864 = vmul.f32 %v1504, %v1744
    %v1865 = vmul.f32 %v1506, %v1758
    %v1866 = vmul.f32 %v1508, %v1772
    %v1867 = vmul.f32 %v1510, %v1786
    %v1868 = vmul.f32 %v1512, %v1800
    %v1869 = vmul.f32 %v1514, %v1814
    %v1870 = vmul.f32 %v1516, %v1828
    %v1871 = vmul.f32 %v1518, %v1842
    %v1872 = vmul.f32 %v1520, %v1856
    %v1873 = vmul.f32 %v1857, %v1012
    %v1874 = vmul.f32 %v1858, %v1012
    %v1875 = vmul.f32 %v1859, %v1012
    %v1876 = vmul.f32 %v1860, %v1012
    %v1877 = vmul.f32 %v1861, %v1012
    %v1878 = vmul.f32 %v1862, %v1012
    %v1879 = vmul.f32 %v1863, %v1012
    %v1880 = vmul.f32 %v1864, %v1012
    %v1881 = vmul.f32 %v1865, %v1016
    %v1882 = vmul.f32 %v1866, %v1016
    %v1883 = vmul.f32 %v1867, %v1016
    %v1884 = vmul.f32 %v1868, %v1016
    %v1885 = vmul.f32 %v1869, %v1016
    %v1886 = vmul.f32 %v1870, %v1016
    %v1887 = vmul.f32 %v1871, %v1016
    %v1888 = vmul.f32 %v1872, %v1016
    %v1889 = vsel %vm1360, %v1873, 0.0
    %v1890 = vrot.slane %v1889, 4
    %v1891 = vadd.f32 %v1889, %v1890
    %v1892 = vrot.slane %v1891, 2
    %v1893 = vadd.f32 %v1891, %v1892
    %v1894 = vrot.slane %v1893, 1
    %v1895 = vadd.f32 %v1893, %v1894
    %v1896 = vsel %vm1360, %v1874, 0.0
    %v1897 = vrot.slane %v1896, 4
    %v1898 = vadd.f32 %v1896, %v1897
    %v1899 = vrot.slane %v1898, 2
    %v1900 = vadd.f32 %v1898, %v1899
    %v1901 = vrot.slane %v1900, 1
    %v1902 = vadd.f32 %v1900, %v1901
    %v1903 = vsel %vm1360, %v1875, 0.0
    %v1904 = vrot.slane %v1903, 4
    %v1905 = vadd.f32 %v1903, %v1904
    %v1906 = vrot.slane %v1905, 2
    %v1907 = vadd.f32 %v1905, %v1906
    %v1908 = vrot.slane %v1907, 1
    %v1909 = vadd.f32 %v1907, %v1908
    %v1910 = vsel %vm1360, %v1876, 0.0
    %v1911 = vrot.slane %v1910, 4
    %v1912 = vadd.f32 %v1910, %v1911
    %v1913 = vrot.slane %v1912, 2
    %v1914 = vadd.f32 %v1912, %v1913
    %v1915 = vrot.slane %v1914, 1
    %v1916 = vadd.f32 %v1914, %v1915
    %v1917 = vsel %vm1360, %v1877, 0.0
    %v1918 = vrot.slane %v1917, 4
    %v1919 = vadd.f32 %v1917, %v1918
    %v1920 = vrot.slane %v1919, 2
    %v1921 = vadd.f32 %v1919, %v1920
    %v1922 = vrot.slane %v1921, 1
    %v1923 = vadd.f32 %v1921, %v1922
    %v1924 = vsel %vm1360, %v1878, 0.0
    %v1925 = vrot.slane %v1924, 4
    %v1926 = vadd.f32 %v1924, %v1925
    %v1927 = vrot.slane %v1926, 2
    %v1928 = vadd.f32 %v1926, %v1927
    %v1929 = vrot.slane %v1928, 1
    %v1930 = vadd.f32 %v1928, %v1929
    %v1931 = vsel %vm1360, %v1879, 0.0
    %v1932 = vrot.slane %v1931, 4
    %v1933 = vadd.f32 %v1931, %v1932
    %v1934 = vrot.slane %v1933, 2
    %v1935 = vadd.f32 %v1933, %v1934
    %v1936 = vrot.slane %v1935, 1
    %v1937 = vadd.f32 %v1935, %v1936
    %v1938 = vsel %vm1360, %v1880, 0.0
    %v1939 = vrot.slane %v1938, 4
    %v1940 = vadd.f32 %v1938, %v1939
    %v1941 = vrot.slane %v1940, 2
    %v1942 = vadd.f32 %v1940, %v1941
    %v1943 = vrot.slane %v1942, 1
    %v1944 = vadd.f32 %v1942, %v1943
    %v1945 = vsel %vm1360, %v1881, 0.0
    %v1946 = vrot.slane %v1945, 4
    %v1947 = vadd.f32 %v1945, %v1946
    %v1948 = vrot.slane %v1947, 2
    %v1949 = vadd.f32 %v1947, %v1948
    %v1950 = vrot.slane %v1949, 1
    %v1951 = vadd.f32 %v1949, %v1950
    %v1952 = vsel %vm1360, %v1882, 0.0
    %v1953 = vrot.slane %v1952, 4
    %v1954 = vadd.f32 %v1952, %v1953
    %v1955 = vrot.slane %v1954, 2
    %v1956 = vadd.f32 %v1954, %v1955
    %v1957 = vrot.slane %v1956, 1
    %v1958 = vadd.f32 %v1956, %v1957
    %v1959 = vsel %vm1360, %v1883, 0.0
    %v1960 = vrot.slane %v1959, 4
    %v1961 = vadd.f32 %v1959, %v1960
    %v1962 = vrot.slane %v1961, 2
    %v1963 = vadd.f32 %v1961, %v1962
    %v1964 = vrot.slane %v1963, 1
    %v1965 = vadd.f32 %v1963, %v1964
    %v1966 = vsel %vm1360, %v1884, 0.0
    %v1967 = vrot.slane %v1966, 4
    %v1968 = vadd.f32 %v1966, %v1967
    %v1969 = vrot.slane %v1968, 2
    %v1970 = vadd.f32 %v1968, %v1969
    %v1971 = vrot.slane %v1970, 1
    %v1972 = vadd.f32 %v1970, %v1971
    %v1973 = vsel %vm1360, %v1885, 0.0
    %v1974 = vrot.slane %v1973, 4
    %v1975 = vadd.f32 %v1973, %v1974
    %v1976 = vrot.slane %v1975, 2
    %v1977 = vadd.f32 %v1975, %v1976
    %v1978 = vrot.slane %v1977, 1
    %v1979 = vadd.f32 %v1977, %v1978
    %v1980 = vsel %vm1360, %v1886, 0.0
    %v1981 = vrot.slane %v1980, 4
    %v1982 = vadd.f32 %v1980, %v1981
    %v1983 = vrot.slane %v1982, 2
    %v1984 = vadd.f32 %v1982, %v1983
    %v1985 = vrot.slane %v1984, 1
    %v1986 = vadd.f32 %v1984, %v1985
    %v1987 = vsel %vm1360, %v1887, 0.0
    %v1988 = vrot.slane %v1987, 4
    %v1989 = vadd.f32 %v1987, %v1988
    %v1990 = vrot.slane %v1989, 2
    %v1991 = vadd.f32 %v1989, %v1990
    %v1992 = vrot.slane %v1991, 1
    %v1993 = vadd.f32 %v1991, %v1992
    %v1994 = vsel %vm1360, %v1888, 0.0
    %v1995 = vrot.slane %v1994, 4
    %v1996 = vadd.f32 %v1994, %v1995
    %v1997 = vrot.slane %v1996, 2
    %v1998 = vadd.f32 %v1996, %v1997
    %v1999 = vrot.slane %v1998, 1
    %v2000 = vadd.f32 %v1998, %v1999
    %v2001 = vmul.f32 %v1857, %v1210
    %v2002 = vmul.f32 %v1858, %v1210
    %v2003 = vmul.f32 %v1859, %v1210
    %v2004 = vmul.f32 %v1860, %v1210
    %v2005 = vmul.f32 %v1861, %v1210
    %v2006 = vmul.f32 %v1862, %v1210
    %v2007 = vmul.f32 %v1863, %v1210
    %v2008 = vmul.f32 %v1864, %v1210
    %v2009 = vmul.f32 %v1865, %v1214
    %v2010 = vmul.f32 %v1866, %v1214
    %v2011 = vmul.f32 %v1867, %v1214
    %v2012 = vmul.f32 %v1868, %v1214
    %v2013 = vmul.f32 %v1869, %v1214
    %v2014 = vmul.f32 %v1870, %v1214
    %v2015 = vmul.f32 %v1871, %v1214
    %v2016 = vmul.f32 %v1872, %v1214
    %v2017 = vsel %vm1360, %v2001, 0.0
    %v2018 = vrot.slane %v2017, 4
    %v2019 = vadd.f32 %v2017, %v2018
    %v2020 = vrot.slane %v2019, 2
    %v2021 = vadd.f32 %v2019, %v2020
    %v2022 = vrot.slane %v2021, 1
    %v2023 = vadd.f32 %v2021, %v2022
    %v2024 = vsel %vm1360, %v2002, 0.0
    %v2025 = vrot.slane %v2024, 4
    %v2026 = vadd.f32 %v2024, %v2025
    %v2027 = vrot.slane %v2026, 2
    %v2028 = vadd.f32 %v2026, %v2027
    %v2029 = vrot.slane %v2028, 1
    %v2030 = vadd.f32 %v2028, %v2029
    %v2031 = vsel %vm1360, %v2003, 0.0
    %v2032 = vrot.slane %v2031, 4
    %v2033 = vadd.f32 %v2031, %v2032
    %v2034 = vrot.slane %v2033, 2
    %v2035 = vadd.f32 %v2033, %v2034
    %v2036 = vrot.slane %v2035, 1
    %v2037 = vadd.f32 %v2035, %v2036
    %v2038 = vsel %vm1360, %v2004, 0.0
    %v2039 = vrot.slane %v2038, 4
    %v2040 = vadd.f32 %v2038, %v2039
    %v2041 = vrot.slane %v2040, 2
    %v2042 = vadd.f32 %v2040, %v2041
    %v2043 = vrot.slane %v2042, 1
    %v2044 = vadd.f32 %v2042, %v2043
    %v2045 = vsel %vm1360, %v2005, 0.0
    %v2046 = vrot.slane %v2045, 4
    %v2047 = vadd.f32 %v2045, %v2046
    %v2048 = vrot.slane %v2047, 2
    %v2049 = vadd.f32 %v2047, %v2048
    %v2050 = vrot.slane %v2049, 1
    %v2051 = vadd.f32 %v2049, %v2050
    %v2052 = vsel %vm1360, %v2006, 0.0
    %v2053 = vrot.slane %v2052, 4
    %v2054 = vadd.f32 %v2052, %v2053
    %v2055 = vrot.slane %v2054, 2
    %v2056 = vadd.f32 %v2054, %v2055
    %v2057 = vrot.slane %v2056, 1
    %v2058 = vadd.f32 %v2056, %v2057
    %v2059 = vsel %vm1360, %v2007, 0.0
    %v2060 = vrot.slane %v2059, 4
    %v2061 = vadd.f32 %v2059, %v2060
    %v2062 = vrot.slane %v2061, 2
    %v2063 = vadd.f32 %v2061, %v2062
    %v2064 = vrot.slane %v2063, 1
    %v2065 = vadd.f32 %v2063, %v2064
    %v2066 = vsel %vm1360, %v2008, 0.0
    %v2067 = vrot.slane %v2066, 4
    %v2068 = vadd.f32 %v2066, %v2067
    %v2069 = vrot.slane %v2068, 2
    %v2070 = vadd.f32 %v2068, %v2069
    %v2071 = vrot.slane %v2070, 1
    %v2072 = vadd.f32 %v2070, %v2071
    %v2073 = vsel %vm1360, %v2009, 0.0
    %v2074 = vrot.slane %v2073, 4
    %v2075 = vadd.f32 %v2073, %v2074
    %v2076 = vrot.slane %v2075, 2
    %v2077 = vadd.f32 %v2075, %v2076
    %v2078 = vrot.slane %v2077, 1
    %v2079 = vadd.f32 %v2077, %v2078
    %v2080 = vsel %vm1360, %v2010, 0.0
    %v2081 = vrot.slane %v2080, 4
    %v2082 = vadd.f32 %v2080, %v2081
    %v2083 = vrot.slane %v2082, 2
    %v2084 = vadd.f32 %v2082, %v2083
    %v2085 = vrot.slane %v2084, 1
    %v2086 = vadd.f32 %v2084, %v2085
    %v2087 = vsel %vm1360, %v2011, 0.0
    %v2088 = vrot.slane %v2087, 4
    %v2089 = vadd.f32 %v2087, %v2088
    %v2090 = vrot.slane %v2089, 2
    %v2091 = vadd.f32 %v2089, %v2090
    %v2092 = vrot.slane %v2091, 1
    %v2093 = vadd.f32 %v2091, %v2092
    %v2094 = vsel %vm1360, %v2012, 0.0
    %v2095 = vrot.slane %v2094, 4
    %v2096 = vadd.f32 %v2094, %v2095
    %v2097 = vrot.slane %v2096, 2
    %v2098 = vadd.f32 %v2096, %v2097
    %v2099 = vrot.slane %v2098, 1
    %v2100 = vadd.f32 %v2098, %v2099
    %v2101 = vsel %vm1360, %v2013, 0.0
    %v2102 = vrot.slane %v2101, 4
    %v2103 = vadd.f32 %v2101, %v2102
    %v2104 = vrot.slane %v2103, 2
    %v2105 = vadd.f32 %v2103, %v2104
    %v2106 = vrot.slane %v2105, 1
    %v2107 = vadd.f32 %v2105, %v2106
    %v2108 = vsel %vm1360, %v2014, 0.0
    %v2109 = vrot.slane %v2108, 4
    %v2110 = vadd.f32 %v2108, %v2109
    %v2111 = vrot.slane %v2110, 2
    %v2112 = vadd.f32 %v2110, %v2111
    %v2113 = vrot.slane %v2112, 1
    %v2114 = vadd.f32 %v2112, %v2113
    %v2115 = vsel %vm1360, %v2015, 0.0
    %v2116 = vrot.slane %v2115, 4
    %v2117 = vadd.f32 %v2115, %v2116
    %v2118 = vrot.slane %v2117, 2
    %v2119 = vadd.f32 %v2117, %v2118
    %v2120 = vrot.slane %v2119, 1
    %v2121 = vadd.f32 %v2119, %v2120
    %v2122 = vsel %vm1360, %v2016, 0.0
    %v2123 = vrot.slane %v2122, 4
    %v2124 = vadd.f32 %v2122, %v2123
    %v2125 = vrot.slane %v2124, 2
    %v2126 = vadd.f32 %v2124, %v2125
    %v2127 = vrot.slane %v2126, 1
    %v2128 = vadd.f32 %v2126, %v2127
    %v2129 = vld [vmem:[%s3] sm:$0xff]
    %s2130 = scalar_lea.vmem %s3, 8
    %v2131 = vld [vmem:[%s2130] sm:$0xff]
    %vm2148 = vcmask 1041409
    %v2149 = vsel %vm2148, %v2030, %v2023
    %vm2150 = vcmask 1042434
    %v2151 = vsel %vm2150, %v2037, %v2149
    %vm2152 = vcmask 1043459
    %v2153 = vsel %vm2152, %v2044, %v2151
    %vm2154 = vcmask 1044484
    %v2155 = vsel %vm2154, %v2051, %v2153
    %vm2156 = vcmask 1045509
    %v2157 = vsel %vm2156, %v2058, %v2155
    %vm2158 = vcmask 1046534
    %v2159 = vsel %vm2158, %v2065, %v2157
    %vm2160 = vcmask 1047559
    %v2161 = vsel %vm2160, %v2072, %v2159
    %v2162 = vsel %vm2148, %v2086, %v2079
    %v2163 = vsel %vm2150, %v2093, %v2162
    %v2164 = vsel %vm2152, %v2100, %v2163
    %v2165 = vsel %vm2154, %v2107, %v2164
    %v2166 = vsel %vm2156, %v2114, %v2165
    %v2167 = vsel %vm2158, %v2121, %v2166
    %v2168 = vsel %vm2160, %v2128, %v2167
    %v2169 = vsel %vm1360, %v2161, 0
    %v2171 = vsel %vm1360, %v2168, 0
    %2173 = vmatpush.msra.mxu0 0.0
    %2174 = vmatpush.msra.mxu0 0.0
    %2175 = vmatpush.msra.mxu0 0.0
    %2176 = vmatpush.msra.mxu0 0.0
    %2177 = vmatpush.msra.mxu0 0.0
    %2178 = vmatpush.msra.mxu0 0.0
    %2179 = vmatpush.msra.mxu0 0.0
    %2180 = vmatpush.msra.mxu0 0.0
    %2181 = vmatpush.msra.mxu0 0.0
    %2182 = vmatpush.msra.mxu0 0.0
    %2183 = vmatpush.msra.mxu0 0.0
    %2184 = vmatpush.msra.mxu0 0.0
    %2185 = vmatpush.msra.mxu0 0.0
    %2186 = vmatpush.msra.mxu0 0.0
    %2187 = vmatpush.msra.mxu0 0.0
    %v2188 = vand.u32 %v2131, 4294901760
    %2189 = vmatpush.msra.mxu0 %v2188
    %v2190 = vand.u32 %v2169, 4294901760
    %v2191 = vsub.f32 %v2169, %v2190
    %v2192 = vand.u32 %v2191, 4294901760
    %v2193 = vsub.f32 %v2191, %v2192
    %v2194 = vand.u32 %v2193, 4294901760
    %2195 = vmatmul.f32.gmra.mxu0 %v2194
    %v2196 = vpop.f32.mrf.mxu0
    %v2197 = vadd.f32 0.0, %v2196
    %v2198 = vand.u32 %v2171, 4294901760
    %v2199 = vsub.f32 %v2171, %v2198
    %v2200 = vand.u32 %v2199, 4294901760
    %v2201 = vsub.f32 %v2199, %v2200
    %v2202 = vand.u32 %v2201, 4294901760
    %2203 = vmatmul.f32.gmra.mxu0 %v2202
    %v2204 = vpop.f32.mrf.mxu0
    %v2205 = vadd.f32 0.0, %v2204
    %2206 = vdwg.mxu0
    %2207 = vmatpush.msra.mxu0 0.0
    %2208 = vmatpush.msra.mxu0 0.0
    %2209 = vmatpush.msra.mxu0 0.0
    %2210 = vmatpush.msra.mxu0 0.0
    %2211 = vmatpush.msra.mxu0 0.0
    %2212 = vmatpush.msra.mxu0 0.0
    %2213 = vmatpush.msra.mxu0 0.0
    %2214 = vmatpush.msra.mxu0 0.0
    %2215 = vmatpush.msra.mxu0 0.0
    %2216 = vmatpush.msra.mxu0 0.0
    %2217 = vmatpush.msra.mxu0 0.0
    %2218 = vmatpush.msra.mxu0 0.0
    %2219 = vmatpush.msra.mxu0 0.0
    %2220 = vmatpush.msra.mxu0 0.0
    %2221 = vmatpush.msra.mxu0 0.0
    %v2222 = vand.u32 %v2131, 4294901760
    %v2223 = vsub.f32 %v2131, %v2222
    %v2224 = vand.u32 %v2223, 4294901760
    %v2225 = vsub.f32 %v2223, %v2224
    %v2226 = vand.u32 %v2225, 4294901760
    %2227 = vmatpush.msra.mxu0 %v2226
    %v2228 = vand.u32 %v2169, 4294901760
    %2229 = vmatmul.f32.gmra.mxu0 %v2228
    %v2230 = vpop.f32.mrf.mxu0
    %v2231 = vadd.f32 %v2197, %v2230
    %v2232 = vand.u32 %v2171, 4294901760
    %2233 = vmatmul.f32.gmra.mxu0 %v2232
    %v2234 = vpop.f32.mrf.mxu0
    %v2235 = vadd.f32 %v2205, %v2234
    %2236 = vdwg.mxu0
    %2237 = vmatpush.msra.mxu0 0.0
    %2238 = vmatpush.msra.mxu0 0.0
    %2239 = vmatpush.msra.mxu0 0.0
    %2240 = vmatpush.msra.mxu0 0.0
    %2241 = vmatpush.msra.mxu0 0.0
    %2242 = vmatpush.msra.mxu0 0.0
    %2243 = vmatpush.msra.mxu0 0.0
    %2244 = vmatpush.msra.mxu0 0.0
    %2245 = vmatpush.msra.mxu0 0.0
    %2246 = vmatpush.msra.mxu0 0.0
    %2247 = vmatpush.msra.mxu0 0.0
    %2248 = vmatpush.msra.mxu0 0.0
    %2249 = vmatpush.msra.mxu0 0.0
    %2250 = vmatpush.msra.mxu0 0.0
    %2251 = vmatpush.msra.mxu0 0.0
    %v2252 = vand.u32 %v2131, 4294901760
    %v2253 = vsub.f32 %v2131, %v2252
    %2254 = vmatpush.msra.mxu0 %v2253
    %v2255 = vand.u32 %v2169, 4294901760
    %v2256 = vsub.f32 %v2169, %v2255
    %2257 = vmatmul.f32.gmra.mxu0 %v2256
    %v2258 = vpop.f32.mrf.mxu0
    %v2259 = vadd.f32 %v2231, %v2258
    %v2260 = vand.u32 %v2171, 4294901760
    %v2261 = vsub.f32 %v2171, %v2260
    %2262 = vmatmul.f32.gmra.mxu0 %v2261
    %v2263 = vpop.f32.mrf.mxu0
    %v2264 = vadd.f32 %v2235, %v2263
    %2265 = vdwg.mxu0
    %2266 = vmatpush.msra.mxu0 0.0
    %2267 = vmatpush.msra.mxu0 0.0
    %2268 = vmatpush.msra.mxu0 0.0
    %2269 = vmatpush.msra.mxu0 0.0
    %2270 = vmatpush.msra.mxu0 0.0
    %2271 = vmatpush.msra.mxu0 0.0
    %2272 = vmatpush.msra.mxu0 0.0
    %2273 = vmatpush.msra.mxu0 0.0
    %2274 = vmatpush.msra.mxu0 0.0
    %2275 = vmatpush.msra.mxu0 0.0
    %2276 = vmatpush.msra.mxu0 0.0
    %2277 = vmatpush.msra.mxu0 0.0
    %2278 = vmatpush.msra.mxu0 0.0
    %2279 = vmatpush.msra.mxu0 0.0
    %2280 = vmatpush.msra.mxu0 0.0
    %v2281 = vand.u32 %v2131, 4294901760
    %2282 = vmatpush.msra.mxu0 %v2281
    %v2283 = vand.u32 %v2169, 4294901760
    %v2284 = vsub.f32 %v2169, %v2283
    %v2285 = vand.u32 %v2284, 4294901760
    %2286 = vmatmul.f32.gmra.mxu0 %v2285
    %v2287 = vpop.f32.mrf.mxu0
    %v2288 = vadd.f32 %v2259, %v2287
    %v2289 = vand.u32 %v2171, 4294901760
    %v2290 = vsub.f32 %v2171, %v2289
    %v2291 = vand.u32 %v2290, 4294901760
    %2292 = vmatmul.f32.gmra.mxu0 %v2291
    %v2293 = vpop.f32.mrf.mxu0
    %v2294 = vadd.f32 %v2264, %v2293
    %2295 = vdwg.mxu0
    %2296 = vmatpush.msra.mxu0 0.0
    %2297 = vmatpush.msra.mxu0 0.0
    %2298 = vmatpush.msra.mxu0 0.0
    %2299 = vmatpush.msra.mxu0 0.0
    %2300 = vmatpush.msra.mxu0 0.0
    %2301 = vmatpush.msra.mxu0 0.0
    %2302 = vmatpush.msra.mxu0 0.0
    %2303 = vmatpush.msra.mxu0 0.0
    %2304 = vmatpush.msra.mxu0 0.0
    %2305 = vmatpush.msra.mxu0 0.0
    %2306 = vmatpush.msra.mxu0 0.0
    %2307 = vmatpush.msra.mxu0 0.0
    %2308 = vmatpush.msra.mxu0 0.0
    %2309 = vmatpush.msra.mxu0 0.0
    %2310 = vmatpush.msra.mxu0 0.0
    %v2311 = vand.u32 %v2131, 4294901760
    %v2312 = vsub.f32 %v2131, %v2311
    %v2313 = vand.u32 %v2312, 4294901760
    %2314 = vmatpush.msra.mxu0 %v2313
    %v2315 = vand.u32 %v2169, 4294901760
    %2316 = vmatmul.f32.gmra.mxu0 %v2315
    %v2317 = vpop.f32.mrf.mxu0
    %v2318 = vadd.f32 %v2288, %v2317
    %v2319 = vand.u32 %v2171, 4294901760
    %2320 = vmatmul.f32.gmra.mxu0 %v2319
    %v2321 = vpop.f32.mrf.mxu0
    %v2322 = vadd.f32 %v2294, %v2321
    %2323 = vdwg.mxu0
    %2324 = vmatpush.msra.mxu0 0.0
    %2325 = vmatpush.msra.mxu0 0.0
    %2326 = vmatpush.msra.mxu0 0.0
    %2327 = vmatpush.msra.mxu0 0.0
    %2328 = vmatpush.msra.mxu0 0.0
    %2329 = vmatpush.msra.mxu0 0.0
    %2330 = vmatpush.msra.mxu0 0.0
    %2331 = vmatpush.msra.mxu0 0.0
    %2332 = vmatpush.msra.mxu0 0.0
    %2333 = vmatpush.msra.mxu0 0.0
    %2334 = vmatpush.msra.mxu0 0.0
    %2335 = vmatpush.msra.mxu0 0.0
    %2336 = vmatpush.msra.mxu0 0.0
    %2337 = vmatpush.msra.mxu0 0.0
    %2338 = vmatpush.msra.mxu0 0.0
    %v2339 = vand.u32 %v2131, 4294901760
    %2340 = vmatpush.msra.mxu0 %v2339
    %v2341 = vand.u32 %v2169, 4294901760
    %2342 = vmatmul.f32.gmra.mxu0 %v2341
    %v2343 = vpop.f32.mrf.mxu0
    %v2344 = vadd.f32 %v2318, %v2343
    %v2345 = vand.u32 %v2171, 4294901760
    %2346 = vmatmul.f32.gmra.mxu0 %v2345
    %v2347 = vpop.f32.mrf.mxu0
    %v2348 = vadd.f32 %v2322, %v2347
    %2349 = vdwg.mxu0
    %v2366 = vsel %vm2148, %v1902, %v1895
    %v2367 = vsel %vm2150, %v1909, %v2366
    %v2368 = vsel %vm2152, %v1916, %v2367
    %v2369 = vsel %vm2154, %v1923, %v2368
    %v2370 = vsel %vm2156, %v1930, %v2369
    %v2371 = vsel %vm2158, %v1937, %v2370
    %v2372 = vsel %vm2160, %v1944, %v2371
    %v2373 = vsel %vm2148, %v1958, %v1951
    %v2374 = vsel %vm2150, %v1965, %v2373
    %v2375 = vsel %vm2152, %v1972, %v2374
    %v2376 = vsel %vm2154, %v1979, %v2375
    %v2377 = vsel %vm2156, %v1986, %v2376
    %v2378 = vsel %vm2158, %v1993, %v2377
    %v2379 = vsel %vm2160, %v2000, %v2378
    %v2380 = vsel %vm1360, %v2372, 0
    %v2382 = vsel %vm1360, %v2379, 0
    %2384 = vmatpush.msra.mxu0 0.0
    %2385 = vmatpush.msra.mxu0 0.0
    %2386 = vmatpush.msra.mxu0 0.0
    %2387 = vmatpush.msra.mxu0 0.0
    %2388 = vmatpush.msra.mxu0 0.0
    %2389 = vmatpush.msra.mxu0 0.0
    %2390 = vmatpush.msra.mxu0 0.0
    %2391 = vmatpush.msra.mxu0 0.0
    %2392 = vmatpush.msra.mxu0 0.0
    %2393 = vmatpush.msra.mxu0 0.0
    %2394 = vmatpush.msra.mxu0 0.0
    %2395 = vmatpush.msra.mxu0 0.0
    %2396 = vmatpush.msra.mxu0 0.0
    %2397 = vmatpush.msra.mxu0 0.0
    %2398 = vmatpush.msra.mxu0 0.0
    %v2399 = vand.u32 %v2129, 4294901760
    %2400 = vmatpush.msra.mxu0 %v2399
    %v2401 = vand.u32 %v2380, 4294901760
    %v2402 = vsub.f32 %v2380, %v2401
    %v2403 = vand.u32 %v2402, 4294901760
    %v2404 = vsub.f32 %v2402, %v2403
    %v2405 = vand.u32 %v2404, 4294901760
    %2406 = vmatmul.f32.gmra.mxu0 %v2405
    %v2407 = vpop.f32.mrf.mxu0
    %v2408 = vadd.f32 %v2344, %v2407
    %v2409 = vand.u32 %v2382, 4294901760
    %v2410 = vsub.f32 %v2382, %v2409
    %v2411 = vand.u32 %v2410, 4294901760
    %v2412 = vsub.f32 %v2410, %v2411
    %v2413 = vand.u32 %v2412, 4294901760
    %2414 = vmatmul.f32.gmra.mxu0 %v2413
    %v2415 = vpop.f32.mrf.mxu0
    %v2416 = vadd.f32 %v2348, %v2415
    %2417 = vdwg.mxu0
    %2418 = vmatpush.msra.mxu0 0.0
    %2419 = vmatpush.msra.mxu0 0.0
    %2420 = vmatpush.msra.mxu0 0.0
    %2421 = vmatpush.msra.mxu0 0.0
    %2422 = vmatpush.msra.mxu0 0.0
    %2423 = vmatpush.msra.mxu0 0.0
    %2424 = vmatpush.msra.mxu0 0.0
    %2425 = vmatpush.msra.mxu0 0.0
    %2426 = vmatpush.msra.mxu0 0.0
    %2427 = vmatpush.msra.mxu0 0.0
    %2428 = vmatpush.msra.mxu0 0.0
    %2429 = vmatpush.msra.mxu0 0.0
    %2430 = vmatpush.msra.mxu0 0.0
    %2431 = vmatpush.msra.mxu0 0.0
    %2432 = vmatpush.msra.mxu0 0.0
    %v2433 = vand.u32 %v2129, 4294901760
    %v2434 = vsub.f32 %v2129, %v2433
    %v2435 = vand.u32 %v2434, 4294901760
    %v2436 = vsub.f32 %v2434, %v2435
    %v2437 = vand.u32 %v2436, 4294901760
    %2438 = vmatpush.msra.mxu0 %v2437
    %v2439 = vand.u32 %v2380, 4294901760
    %2440 = vmatmul.f32.gmra.mxu0 %v2439
    %v2441 = vpop.f32.mrf.mxu0
    %v2442 = vadd.f32 %v2408, %v2441
    %v2443 = vand.u32 %v2382, 4294901760
    %2444 = vmatmul.f32.gmra.mxu0 %v2443
    %v2445 = vpop.f32.mrf.mxu0
    %v2446 = vadd.f32 %v2416, %v2445
    %2447 = vdwg.mxu0
    %2448 = vmatpush.msra.mxu0 0.0
    %2449 = vmatpush.msra.mxu0 0.0
    %2450 = vmatpush.msra.mxu0 0.0
    %2451 = vmatpush.msra.mxu0 0.0
    %2452 = vmatpush.msra.mxu0 0.0
    %2453 = vmatpush.msra.mxu0 0.0
    %2454 = vmatpush.msra.mxu0 0.0
    %2455 = vmatpush.msra.mxu0 0.0
    %2456 = vmatpush.msra.mxu0 0.0
    %2457 = vmatpush.msra.mxu0 0.0
    %2458 = vmatpush.msra.mxu0 0.0
    %2459 = vmatpush.msra.mxu0 0.0
    %2460 = vmatpush.msra.mxu0 0.0
    %2461 = vmatpush.msra.mxu0 0.0
    %2462 = vmatpush.msra.mxu0 0.0
    %v2463 = vand.u32 %v2129, 4294901760
    %v2464 = vsub.f32 %v2129, %v2463
    %2465 = vmatpush.msra.mxu0 %v2464
    %v2466 = vand.u32 %v2380, 4294901760
    %v2467 = vsub.f32 %v2380, %v2466
    %2468 = vmatmul.f32.gmra.mxu0 %v2467
    %v2469 = vpop.f32.mrf.mxu0
    %v2470 = vadd.f32 %v2442, %v2469
    %v2471 = vand.u32 %v2382, 4294901760
    %v2472 = vsub.f32 %v2382, %v2471
    %2473 = vmatmul.f32.gmra.mxu0 %v2472
    %v2474 = vpop.f32.mrf.mxu0
    %v2475 = vadd.f32 %v2446, %v2474
    %2476 = vdwg.mxu0
    %2477 = vmatpush.msra.mxu0 0.0
    %2478 = vmatpush.msra.mxu0 0.0
    %2479 = vmatpush.msra.mxu0 0.0
    %2480 = vmatpush.msra.mxu0 0.0
    %2481 = vmatpush.msra.mxu0 0.0
    %2482 = vmatpush.msra.mxu0 0.0
    %2483 = vmatpush.msra.mxu0 0.0
    %2484 = vmatpush.msra.mxu0 0.0
    %2485 = vmatpush.msra.mxu0 0.0
    %2486 = vmatpush.msra.mxu0 0.0
    %2487 = vmatpush.msra.mxu0 0.0
    %2488 = vmatpush.msra.mxu0 0.0
    %2489 = vmatpush.msra.mxu0 0.0
    %2490 = vmatpush.msra.mxu0 0.0
    %2491 = vmatpush.msra.mxu0 0.0
    %v2492 = vand.u32 %v2129, 4294901760
    %2493 = vmatpush.msra.mxu0 %v2492
    %v2494 = vand.u32 %v2380, 4294901760
    %v2495 = vsub.f32 %v2380, %v2494
    %v2496 = vand.u32 %v2495, 4294901760
    %2497 = vmatmul.f32.gmra.mxu0 %v2496
    %v2498 = vpop.f32.mrf.mxu0
    %v2499 = vadd.f32 %v2470, %v2498
    %v2500 = vand.u32 %v2382, 4294901760
    %v2501 = vsub.f32 %v2382, %v2500
    %v2502 = vand.u32 %v2501, 4294901760
    %2503 = vmatmul.f32.gmra.mxu0 %v2502
    %v2504 = vpop.f32.mrf.mxu0
    %v2505 = vadd.f32 %v2475, %v2504
    %2506 = vdwg.mxu0
    %2507 = vmatpush.msra.mxu0 0.0
    %2508 = vmatpush.msra.mxu0 0.0
    %2509 = vmatpush.msra.mxu0 0.0
    %2510 = vmatpush.msra.mxu0 0.0
    %2511 = vmatpush.msra.mxu0 0.0
    %2512 = vmatpush.msra.mxu0 0.0
    %2513 = vmatpush.msra.mxu0 0.0
    %2514 = vmatpush.msra.mxu0 0.0
    %2515 = vmatpush.msra.mxu0 0.0
    %2516 = vmatpush.msra.mxu0 0.0
    %2517 = vmatpush.msra.mxu0 0.0
    %2518 = vmatpush.msra.mxu0 0.0
    %2519 = vmatpush.msra.mxu0 0.0
    %2520 = vmatpush.msra.mxu0 0.0
    %2521 = vmatpush.msra.mxu0 0.0
    %v2522 = vand.u32 %v2129, 4294901760
    %v2523 = vsub.f32 %v2129, %v2522
    %v2524 = vand.u32 %v2523, 4294901760
    %2525 = vmatpush.msra.mxu0 %v2524
    %v2526 = vand.u32 %v2380, 4294901760
    %2527 = vmatmul.f32.gmra.mxu0 %v2526
    %v2528 = vpop.f32.mrf.mxu0
    %v2529 = vadd.f32 %v2499, %v2528
    %v2530 = vand.u32 %v2382, 4294901760
    %2531 = vmatmul.f32.gmra.mxu0 %v2530
    %v2532 = vpop.f32.mrf.mxu0
    %v2533 = vadd.f32 %v2505, %v2532
    %2534 = vdwg.mxu0
    %2535 = vmatpush.msra.mxu0 0.0
    %2536 = vmatpush.msra.mxu0 0.0
    %2537 = vmatpush.msra.mxu0 0.0
    %2538 = vmatpush.msra.mxu0 0.0
    %2539 = vmatpush.msra.mxu0 0.0
    %2540 = vmatpush.msra.mxu0 0.0
    %2541 = vmatpush.msra.mxu0 0.0
    %2542 = vmatpush.msra.mxu0 0.0
    %2543 = vmatpush.msra.mxu0 0.0
    %2544 = vmatpush.msra.mxu0 0.0
    %2545 = vmatpush.msra.mxu0 0.0
    %2546 = vmatpush.msra.mxu0 0.0
    %2547 = vmatpush.msra.mxu0 0.0
    %2548 = vmatpush.msra.mxu0 0.0
    %2549 = vmatpush.msra.mxu0 0.0
    %v2550 = vand.u32 %v2129, 4294901760
    %2551 = vmatpush.msra.mxu0 %v2550
    %v2552 = vand.u32 %v2380, 4294901760
    %2553 = vmatmul.f32.gmra.mxu0 %v2552
    %v2554 = vpop.f32.mrf.mxu0
    %v2555 = vadd.f32 %v2529, %v2554
    %v2556 = vand.u32 %v2382, 4294901760
    %2557 = vmatmul.f32.gmra.mxu0 %v2556
    %v2558 = vpop.f32.mrf.mxu0
    %v2559 = vadd.f32 %v2533, %v2558
    %2560 = vdwg.mxu0
    %v2561 = vld [vmem:[%s4] sm:$0x1]
    %v2563 = vperm.slane %v2561, 0
    %v2565 = vadd.f32 %v2555, %v2563
    %v2566 = vadd.f32 %v2559, %v2563
    %2567 = vst.msk [vmem:[#allocation2] sm:$0xff] %vm29, %v2565
    %2568 = vst.msk [vmem:[#allocation2 + $0x8] sm:$0xff] %vm29, %v2566
    // Predicated region
    $region22: #{attention_forward.1} parent=1 // pred_check
      _
    $region23: #{attention_forward.1} parent=1 // pred_check_branch
      %2570 = sbr.rel (0) target = $region25
    $region24: #{attention_forward.1} parent=1 // pred_region
      %2572 = vsyncadd [#allocation3], 0
      %s2573 = sshll.u32 [#allocation2], 4
      %s2574 = int_to_ptr.vmem [resolvable:$true] %s2573
      %s2575 = sshll.u32 %s5, 4
      %s2576 = int_to_ptr.hbm [resolvable:$true] %s2575
      %2581 = dma.vmem_to_hbm [thread:$0]  %s2574, 256, %s2576, [#allocation3], 128, 128, 8
    $region25: #{attention_forward.1} parent=1 // pred_fallthru
      _
    // Predicated region
    $region26: #{attention_forward.1} parent=1 // pred_check
      _
    $region27: #{attention_forward.1} parent=1 // pred_check_branch
      %2583 = sbr.rel (0) target = $region29
    $region28: #{attention_forward.1} parent=1 // pred_region
      %2585 = dma.done [#allocation3], 256
    $region29: #{attention_forward.1} parent=1 // pred_fallthru
      _
    %2586 = vsyncpa [#allocation3], 1

</llo_original>
